<compile_context>
chip_gen: v7x
topology: tpu7x:2x2x1
jax: 0.10.0
libtpu: 0.0.40
codegen_flags: <defaults>
</compile_context>

<pallas_src>
import math
import functools

import jax
import jax.numpy as jnp
from jax.experimental import pallas as pl
from jax.experimental.pallas import tpu as pltpu


def _mha_kernel(x_ref, wqkv_ref, bqkv_ref, wo_ref, bo_ref, o_ref,
                *, num_heads: int, depth: int, d_model: int, matmul_dtype):
    bt, s, _ = x_ref.shape          # (Bt, S, 3D)
    rows = bt * s
    exact = jnp.dtype(matmul_dtype) == jnp.dtype(jnp.float32)

    # Fused Q/K/V projection on the flattened row matrix: one MXU pass,
    # [q|k|v] @ block_diag(Wq, Wk, Wv) == [q@Wq | k@Wk | v@Wv].
    x2 = x_ref[...].reshape(rows, 3 * d_model).astype(matmul_dtype)
    qkv = (jnp.dot(x2, wqkv_ref[...], preferred_element_type=jnp.float32)
           + bqkv_ref[...])                                    # (rows, 3D) f32
    qkv = qkv.reshape(bt, s, 3 * d_model)

    wo = wo_ref[...]                                           # (D, D)
    acc = jnp.zeros((rows, d_model), dtype=jnp.float32)

    # Per-head attention (static unroll, H=4). Batched einsum over the Bt dim,
    # contraction on the last axis -> no explicit transpose, no concatenate.
    for h in range(num_heads):
        lo = h * depth
        qh = qkv[:, :, lo:lo + depth].astype(matmul_dtype)                   # (Bt,S,dh)
        kh = qkv[:, :, d_model + lo:d_model + lo + depth].astype(matmul_dtype)
        vh = qkv[:, :, 2 * d_model + lo:2 * d_model + lo + depth]

        # 1/sqrt(depth) is already folded into Wq/bq in the wrapper.
        scores = jnp.einsum("bqd,bkd->bqk", qh, kh,
                            preferred_element_type=jnp.float32)              # (Bt,S,S)
        # TODO(synk): optional attention mask (masked_fill before softmax) not wired in;
        # only the mask=None path of the reference module is implemented.
        m = jnp.max(scores, axis=-1, keepdims=True)
        e = jnp.exp(scores - m)
        l = jnp.sum(e, axis=-1, keepdims=True)
        ctx = jnp.einsum("bqk,bkd->bqd", e.astype(matmul_dtype),
                         vh.astype(matmul_dtype),
                         preferred_element_type=jnp.float32)                 # (Bt,S,dh)
        # Deferred softmax normalization; approx reciprocal (EUP) on the bf16 path.
        ctx = ctx * pl.reciprocal(l, approx=not exact)

        # Head-combine + output projection fused: acc += ctx_h @ Wo[h*dh:(h+1)*dh, :]
        acc = acc + jnp.dot(ctx.reshape(rows, depth).astype(matmul_dtype),
                            wo[lo:lo + depth, :],
                            preferred_element_type=jnp.float32)

    out = acc + bo_ref[...]
    o_ref[...] = out.reshape(bt, s, d_model).astype(o_ref.dtype)


def _choose_batch_tile(batch: int, seq: int, target_rows: int = 256) -> int:
    """Pick Bt (a divisor of batch) so Bt*seq reaches the MXU row target when
    possible, while keeping >= 2 grid steps for dual-TensorCore chips."""
    divisors = [d for d in range(1, batch + 1) if batch % d == 0]
    for d in divisors:                       # smallest divisor hitting the target
        if d * seq >= target_rows:
            return d
    multi = [d for d in divisors if batch // d >= 2]
    return multi[-1] if multi else divisors[-1]


def multi_head_attention(q, k, v, params, *, num_heads: int,
                         matmul_dtype=jnp.float32):
    """q, k, v: (B, S, D) float32.  params: PyTorch-convention weights ([out, in])."""
    B, S, D = q.shape
    assert D % num_heads == 0
    depth = D // num_heads
    scale = 1.0 / math.sqrt(depth)

    # --- wrapper-side glue (one-time layout plumbing) -------------------------
    wq = params["wq_w"].T * scale            # fold 1/sqrt(depth) into Wq / bq
    bq = params["wq_b"] * scale
    wk = params["wk_w"].T
    wv = params["wv_w"].T
    wo = params["wo_w"].T
    bo = params["wo_b"].reshape(1, D)

    # Block-diagonal fused QKV weight and concatenated bias / inputs.
    w_qkv = jnp.zeros((3 * D, 3 * D), jnp.float32)
    w_qkv = w_qkv.at[0:D, 0:D].set(wq)
    w_qkv = w_qkv.at[D:2 * D, D:2 * D].set(wk)
    w_qkv = w_qkv.at[2 * D:, 2 * D:].set(wv)
    b_qkv = jnp.concatenate([bq, params["wk_b"], params["wv_b"]]).reshape(1, 3 * D)
    x_cat = jnp.concatenate([q, k, v], axis=-1).astype(matmul_dtype)   # (B, S, 3D)

    w_qkv = w_qkv.astype(matmul_dtype)
    wo = wo.astype(matmul_dtype)

    bt = _choose_batch_tile(B, S)
    grid = (B // bt,)

    kernel = functools.partial(_mha_kernel, num_heads=num_heads, depth=depth,
                               d_model=D, matmul_dtype=matmul_dtype)

    return pl.pallas_call(
        kernel,
        out_shape=jax.ShapeDtypeStruct((B, S, D), q.dtype),
        grid_spec=pltpu.PrefetchScalarGridSpec(
            num_scalar_prefetch=0,
            grid=grid,
            in_specs=[
                pl.BlockSpec((bt, S, 3 * D), lambda b: (b, 0, 0)),   # q|k|v
                pl.BlockSpec((3 * D, 3 * D), lambda b: (0, 0)),      # fused W
                pl.BlockSpec((1, 3 * D), lambda b: (0, 0)),          # fused bias
                pl.BlockSpec((D, D), lambda b: (0, 0)),              # Wo
                pl.BlockSpec((1, D), lambda b: (0, 0)),              # bo
            ],
            out_specs=pl.BlockSpec((bt, S, D), lambda b: (b, 0, 0)),
        ),
        compiler_params=pltpu.CompilerParams(
            dimension_semantics=("parallel",)),
    )(x_cat, w_qkv, b_qkv, wo, bo)


def _reference_mha(q, k, v, params, *, num_heads: int):
    """Pure-JAX reference mirroring the PyTorch forward semantics (mask=None)."""
    B, S, D = q.shape
    depth = D // num_heads

    def lin(x, w, b):
        return x @ w.T + b

    def split(x):
        return x.reshape(B, S, num_heads, depth).transpose(0, 2, 1, 3)

    Q = split(lin(q, params["wq_w"], params["wq_b"]))
    K = split(lin(k, params["wk_w"], params["wk_b"]))
    V = split(lin(v, params["wv_w"], params["wv_b"]))

    scores = jnp.einsum("bhqd,bhkd->bhqk", Q, K) / math.sqrt(depth)
    probs = jax.nn.softmax(scores, axis=-1)
    attn = jnp.einsum("bhqk,bhkd->bhqd", probs, V)
    attn = attn.transpose(0, 2, 1, 3).reshape(B, S, D)
    return lin(attn, params["wo_w"], params["wo_b"])


if __name__ == "__main__":
    D, H = 32, 4

    key = jax.random.PRNGKey(0)
    keys = jax.random.split(key, 14)

    # Deterministic parameter init (PyTorch nn.Linear convention: W is [out, in]).
    bound = 1.0 / math.sqrt(D)
    params = {
        "wq_w": jax.random.uniform(keys[0], (D, D), jnp.float32, -bound, bound),
        "wq_b": jax.random.uniform(keys[1], (D,), jnp.float32, -bound, bound),
        "wk_w": jax.random.uniform(keys[2], (D, D), jnp.float32, -bound, bound),
        "wk_b": jax.random.uniform(keys[3], (D,), jnp.float32, -bound, bound),
        "wv_w": jax.random.uniform(keys[4], (D, D), jnp.float32, -bound, bound),
        "wv_b": jax.random.uniform(keys[5], (D,), jnp.float32, -bound, bound),
        "wo_w": jax.random.uniform(keys[6], (D, D), jnp.float32, -bound, bound),
        "wo_b": jax.random.uniform(keys[7], (D,), jnp.float32, -bound, bound),
    }

    kidx = 8
    for (B, S) in [(2, 8), (8, 8)]:        # second case exercises batch folding (Bt>1)
        q = jax.random.normal(keys[kidx + 0], (B, S, D), jnp.float32)
        k = jax.random.normal(keys[kidx + 1], (B, S, D), jnp.float32)
        v = jax.random.normal(keys[kidx + 2], (B, S, D), jnp.float32)
        kidx += 3

        ref = _reference_mha(q, k, v, params, num_heads=H)

        # f32 MXU path (exact): tight tolerance.
        out = jax.block_until_ready(
            multi_head_attention(q, k, v, params, num_heads=H))
        assert out.shape == (B, S, D)
        assert jnp.allclose(out, ref, atol=1e-4, rtol=1e-4), "f32 mismatch vs reference"

        # bf16 MXU path (v6e/v7x fast path): f32 accumulation + f32 softmax.
        out_bf16 = jax.block_until_ready(
            multi_head_attention(q, k, v, params, num_heads=H,
                                 matmul_dtype=jnp.bfloat16))
        assert jnp.allclose(out_bf16, ref, atol=5e-2, rtol=5e-2), \
            "bf16 mismatch vs reference"

    print("KERNEL_OK")
</pallas_src>

<mosaic_0001>
module attributes {stable_mosaic.version = 11 : i64} {
  func.func @_mha_kernel(%arg0: i32, %arg1: memref<1x8x96xf32, #tpu.memory_space<vmem>>, %arg2: memref<96x96xf32, #tpu.memory_space<vmem>>, %arg3: memref<1x96xf32, #tpu.memory_space<vmem>>, %arg4: memref<32x32xf32, #tpu.memory_space<vmem>>, %arg5: memref<1x32xf32, #tpu.memory_space<vmem>>, %arg6: memref<1x8x32xf32, #tpu.memory_space<vmem>>) attributes {dimension_semantics = [#tpu.dimension_semantics<parallel>], iteration_bounds = array<i64: 2>, scalar_prefetch = 0 : i64, scratch_operands = 0 : i64, tpu.core_type = #tpu.core_type<tc>, window_params = [{transform_indices = @transform_0, window_bounds = array<i64: 1, 8, 96>}, {pipeline_mode = #tpu.pipeline_mode<synchronous>, transform_indices = @transform_1, window_bounds = array<i64: 96, 96>}, {pipeline_mode = #tpu.pipeline_mode<synchronous>, transform_indices = @transform_2, window_bounds = array<i64: 1, 96>}, {pipeline_mode = #tpu.pipeline_mode<synchronous>, transform_indices = @transform_3, window_bounds = array<i64: 32, 32>}, {pipeline_mode = #tpu.pipeline_mode<synchronous>, transform_indices = @transform_4, window_bounds = array<i64: 1, 32>}, {transform_indices = @transform_5, window_bounds = array<i64: 1, 8, 32>}]} {
    %c0 = arith.constant 0 : index
    %c0_0 = arith.constant 0 : index
    %c0_1 = arith.constant 0 : index
    %0 = vector.load %arg1[%c0, %c0_0, %c0_1] : memref<1x8x96xf32, #tpu.memory_space<vmem>>, vector<1x8x96xf32>
    %1 = vector.shape_cast %0 : vector<1x8x96xf32> to vector<8x96xf32>
    %c0_2 = arith.constant 0 : index
    %c0_3 = arith.constant 0 : index
    %2 = vector.load %arg2[%c0_2, %c0_3] : memref<96x96xf32, #tpu.memory_space<vmem>>, vector<96x96xf32>
    %cst = arith.constant dense<0.000000e+00> : vector<8x96xf32>
    %3 = tpu.matmul %1, %2, %cst {dimension_numbers = #tpu.dot_dimension_numbers<[1], [0], [0], [1], [0, 0, 1, 1], [], []>} : vector<8x96xf32>, vector<96x96xf32>, vector<8x96xf32> -> vector<8x96xf32>
    %c0_4 = arith.constant 0 : index
    %c0_5 = arith.constant 0 : index
    %4 = vector.load %arg3[%c0_4, %c0_5] : memref<1x96xf32, #tpu.memory_space<vmem>>, vector<1x96xf32>
    %5 = vector.broadcast %4 : vector<1x96xf32> to vector<8x96xf32>
    %6 = arith.addf %3, %5 : vector<8x96xf32>
    %7 = vector.shape_cast %6 : vector<8x96xf32> to vector<1x8x96xf32>
    %c0_6 = arith.constant 0 : index
    %c0_7 = arith.constant 0 : index
    %8 = vector.load %arg4[%c0_6, %c0_7] : memref<32x32xf32, #tpu.memory_space<vmem>>, vector<32x32xf32>
    %cst_8 = arith.constant 0.000000e+00 : f32
    %9 = vector.broadcast %cst_8 : f32 to vector<8x32xf32>
    %10 = vector.extract_strided_slice %7 {offsets = [0, 0, 0], sizes = [1, 8, 8], strides = [1, 1, 1]} : vector<1x8x96xf32> to vector<1x8x8xf32>
    %11 = vector.extract_strided_slice %7 {offsets = [0, 0, 32], sizes = [1, 8, 8], strides = [1, 1, 1]} : vector<1x8x96xf32> to vector<1x8x8xf32>
    %12 = vector.extract_strided_slice %7 {offsets = [0, 0, 64], sizes = [1, 8, 8], strides = [1, 1, 1]} : vector<1x8x96xf32> to vector<1x8x8xf32>
    "tpu.trace_start"() <{level = 10 : i32, message = "bqd,bkd->bqk"}> : () -> ()
    %cst_9 = arith.constant dense<0.000000e+00> : vector<1x8x8xf32>
    %13 = tpu.matmul %10, %11, %cst_9 {dimension_numbers = #tpu.dot_dimension_numbers<[2], [2], [1], [1], [0, 0, 0, 1, 1, 1], [0], [0]>} : vector<1x8x8xf32>, vector<1x8x8xf32>, vector<1x8x8xf32> -> vector<1x8x8xf32>
    "tpu.trace_stop"() : () -> ()
    %cst_10 = arith.constant dense<0xFF800000> : vector<1x8xf32>
    %14 = vector.multi_reduction <maximumf>, %13, %cst_10 [2] : vector<1x8x8xf32> to vector<1x8xf32>
    %15 = vector.shape_cast %14 : vector<1x8xf32> to vector<1x8x1xf32>
    %16 = vector.broadcast %15 : vector<1x8x1xf32> to vector<1x8x8xf32>
    %17 = arith.subf %13, %16 : vector<1x8x8xf32>
    %18 = math.exp %17 : vector<1x8x8xf32>
    %cst_11 = arith.constant dense<0.000000e+00> : vector<1x8xf32>
    %19 = vector.multi_reduction <add>, %18, %cst_11 [2] : vector<1x8x8xf32> to vector<1x8xf32>
    %20 = vector.shape_cast %19 : vector<1x8xf32> to vector<1x8x1xf32>
    "tpu.trace_start"() <{level = 10 : i32, message = "bqk,bkd->bqd"}> : () -> ()
    %cst_12 = arith.constant dense<0.000000e+00> : vector<1x8x8xf32>
    %21 = tpu.matmul %18, %12, %cst_12 {dimension_numbers = #tpu.dot_dimension_numbers<[2], [1], [1], [2], [0, 0, 0, 1, 1, 2], [0], [0]>} : vector<1x8x8xf32>, vector<1x8x8xf32>, vector<1x8x8xf32> -> vector<1x8x8xf32>
    "tpu.trace_stop"() : () -> ()
    %22 = tpu.reciprocal %20 : vector<1x8x1xf32> -> vector<1x8x1xf32>
    %23 = vector.broadcast %22 : vector<1x8x1xf32> to vector<1x8x8xf32>
    %24 = arith.mulf %21, %23 : vector<1x8x8xf32>
    %25 = vector.shape_cast %24 : vector<1x8x8xf32> to vector<8x8xf32>
    %26 = vector.extract_strided_slice %8 {offsets = [0, 0], sizes = [8, 32], strides = [1, 1]} : vector<32x32xf32> to vector<8x32xf32>
    %cst_13 = arith.constant dense<0.000000e+00> : vector<8x32xf32>
    %27 = tpu.matmul %25, %26, %cst_13 {dimension_numbers = #tpu.dot_dimension_numbers<[1], [0], [0], [1], [0, 0, 1, 1], [], []>} : vector<8x8xf32>, vector<8x32xf32>, vector<8x32xf32> -> vector<8x32xf32>
    %28 = arith.addf %9, %27 : vector<8x32xf32>
    %29 = vector.extract_strided_slice %7 {offsets = [0, 0, 8], sizes = [1, 8, 8], strides = [1, 1, 1]} : vector<1x8x96xf32> to vector<1x8x8xf32>
    %30 = vector.extract_strided_slice %7 {offsets = [0, 0, 40], sizes = [1, 8, 8], strides = [1, 1, 1]} : vector<1x8x96xf32> to vector<1x8x8xf32>
    %31 = vector.extract_strided_slice %7 {offsets = [0, 0, 72], sizes = [1, 8, 8], strides = [1, 1, 1]} : vector<1x8x96xf32> to vector<1x8x8xf32>
    "tpu.trace_start"() <{level = 10 : i32, message = "bqd,bkd->bqk"}> : () -> ()
    %cst_14 = arith.constant dense<0.000000e+00> : vector<1x8x8xf32>
    %32 = tpu.matmul %29, %30, %cst_14 {dimension_numbers = #tpu.dot_dimension_numbers<[2], [2], [1], [1], [0, 0, 0, 1, 1, 1], [0], [0]>} : vector<1x8x8xf32>, vector<1x8x8xf32>, vector<1x8x8xf32> -> vector<1x8x8xf32>
    "tpu.trace_stop"() : () -> ()
    %cst_15 = arith.constant dense<0xFF800000> : vector<1x8xf32>
    %33 = vector.multi_reduction <maximumf>, %32, %cst_15 [2] : vector<1x8x8xf32> to vector<1x8xf32>
    %34 = vector.shape_cast %33 : vector<1x8xf32> to vector<1x8x1xf32>
    %35 = vector.broadcast %34 : vector<1x8x1xf32> to vector<1x8x8xf32>
    %36 = arith.subf %32, %35 : vector<1x8x8xf32>
    %37 = math.exp %36 : vector<1x8x8xf32>
    %cst_16 = arith.constant dense<0.000000e+00> : vector<1x8xf32>
    %38 = vector.multi_reduction <add>, %37, %cst_16 [2] : vector<1x8x8xf32> to vector<1x8xf32>
    %39 = vector.shape_cast %38 : vector<1x8xf32> to vector<1x8x1xf32>
    "tpu.trace_start"() <{level = 10 : i32, message = "bqk,bkd->bqd"}> : () -> ()
    %cst_17 = arith.constant dense<0.000000e+00> : vector<1x8x8xf32>
    %40 = tpu.matmul %37, %31, %cst_17 {dimension_numbers = #tpu.dot_dimension_numbers<[2], [1], [1], [2], [0, 0, 0, 1, 1, 2], [0], [0]>} : vector<1x8x8xf32>, vector<1x8x8xf32>, vector<1x8x8xf32> -> vector<1x8x8xf32>
    "tpu.trace_stop"() : () -> ()
    %41 = tpu.reciprocal %39 : vector<1x8x1xf32> -> vector<1x8x1xf32>
    %42 = vector.broadcast %41 : vector<1x8x1xf32> to vector<1x8x8xf32>
    %43 = arith.mulf %40, %42 : vector<1x8x8xf32>
    %44 = vector.shape_cast %43 : vector<1x8x8xf32> to vector<8x8xf32>
    %45 = vector.extract_strided_slice %8 {offsets = [8, 0], sizes = [8, 32], strides = [1, 1]} : vector<32x32xf32> to vector<8x32xf32>
    %cst_18 = arith.constant dense<0.000000e+00> : vector<8x32xf32>
    %46 = tpu.matmul %44, %45, %cst_18 {dimension_numbers = #tpu.dot_dimension_numbers<[1], [0], [0], [1], [0, 0, 1, 1], [], []>} : vector<8x8xf32>, vector<8x32xf32>, vector<8x32xf32> -> vector<8x32xf32>
    %47 = arith.addf %28, %46 : vector<8x32xf32>
    %48 = vector.extract_strided_slice %7 {offsets = [0, 0, 16], sizes = [1, 8, 8], strides = [1, 1, 1]} : vector<1x8x96xf32> to vector<1x8x8xf32>
    %49 = vector.extract_strided_slice %7 {offsets = [0, 0, 48], sizes = [1, 8, 8], strides = [1, 1, 1]} : vector<1x8x96xf32> to vector<1x8x8xf32>
    %50 = vector.extract_strided_slice %7 {offsets = [0, 0, 80], sizes = [1, 8, 8], strides = [1, 1, 1]} : vector<1x8x96xf32> to vector<1x8x8xf32>
    "tpu.trace_start"() <{level = 10 : i32, message = "bqd,bkd->bqk"}> : () -> ()
    %cst_19 = arith.constant dense<0.000000e+00> : vector<1x8x8xf32>
    %51 = tpu.matmul %48, %49, %cst_19 {dimension_numbers = #tpu.dot_dimension_numbers<[2], [2], [1], [1], [0, 0, 0, 1, 1, 1], [0], [0]>} : vector<1x8x8xf32>, vector<1x8x8xf32>, vector<1x8x8xf32> -> vector<1x8x8xf32>
    "tpu.trace_stop"() : () -> ()
    %cst_20 = arith.constant dense<0xFF800000> : vector<1x8xf32>
    %52 = vector.multi_reduction <maximumf>, %51, %cst_20 [2] : vector<1x8x8xf32> to vector<1x8xf32>
    %53 = vector.shape_cast %52 : vector<1x8xf32> to vector<1x8x1xf32>
    %54 = vector.broadcast %53 : vector<1x8x1xf32> to vector<1x8x8xf32>
    %55 = arith.subf %51, %54 : vector<1x8x8xf32>
    %56 = math.exp %55 : vector<1x8x8xf32>
    %cst_21 = arith.constant dense<0.000000e+00> : vector<1x8xf32>
    %57 = vector.multi_reduction <add>, %56, %cst_21 [2] : vector<1x8x8xf32> to vector<1x8xf32>
    %58 = vector.shape_cast %57 : vector<1x8xf32> to vector<1x8x1xf32>
    "tpu.trace_start"() <{level = 10 : i32, message = "bqk,bkd->bqd"}> : () -> ()
    %cst_22 = arith.constant dense<0.000000e+00> : vector<1x8x8xf32>
    %59 = tpu.matmul %56, %50, %cst_22 {dimension_numbers = #tpu.dot_dimension_numbers<[2], [1], [1], [2], [0, 0, 0, 1, 1, 2], [0], [0]>} : vector<1x8x8xf32>, vector<1x8x8xf32>, vector<1x8x8xf32> -> vector<1x8x8xf32>
    "tpu.trace_stop"() : () -> ()
    %60 = tpu.reciprocal %58 : vector<1x8x1xf32> -> vector<1x8x1xf32>
    %61 = vector.broadcast %60 : vector<1x8x1xf32> to vector<1x8x8xf32>
    %62 = arith.mulf %59, %61 : vector<1x8x8xf32>
    %63 = vector.shape_cast %62 : vector<1x8x8xf32> to vector<8x8xf32>
    %64 = vector.extract_strided_slice %8 {offsets = [16, 0], sizes = [8, 32], strides = [1, 1]} : vector<32x32xf32> to vector<8x32xf32>
    %cst_23 = arith.constant dense<0.000000e+00> : vector<8x32xf32>
    %65 = tpu.matmul %63, %64, %cst_23 {dimension_numbers = #tpu.dot_dimension_numbers<[1], [0], [0], [1], [0, 0, 1, 1], [], []>} : vector<8x8xf32>, vector<8x32xf32>, vector<8x32xf32> -> vector<8x32xf32>
    %66 = arith.addf %47, %65 : vector<8x32xf32>
    %67 = vector.extract_strided_slice %7 {offsets = [0, 0, 24], sizes = [1, 8, 8], strides = [1, 1, 1]} : vector<1x8x96xf32> to vector<1x8x8xf32>
    %68 = vector.extract_strided_slice %7 {offsets = [0, 0, 56], sizes = [1, 8, 8], strides = [1, 1, 1]} : vector<1x8x96xf32> to vector<1x8x8xf32>
    %69 = vector.extract_strided_slice %7 {offsets = [0, 0, 88], sizes = [1, 8, 8], strides = [1, 1, 1]} : vector<1x8x96xf32> to vector<1x8x8xf32>
    "tpu.trace_start"() <{level = 10 : i32, message = "bqd,bkd->bqk"}> : () -> ()
    %cst_24 = arith.constant dense<0.000000e+00> : vector<1x8x8xf32>
    %70 = tpu.matmul %67, %68, %cst_24 {dimension_numbers = #tpu.dot_dimension_numbers<[2], [2], [1], [1], [0, 0, 0, 1, 1, 1], [0], [0]>} : vector<1x8x8xf32>, vector<1x8x8xf32>, vector<1x8x8xf32> -> vector<1x8x8xf32>
    "tpu.trace_stop"() : () -> ()
    %cst_25 = arith.constant dense<0xFF800000> : vector<1x8xf32>
    %71 = vector.multi_reduction <maximumf>, %70, %cst_25 [2] : vector<1x8x8xf32> to vector<1x8xf32>
    %72 = vector.shape_cast %71 : vector<1x8xf32> to vector<1x8x1xf32>
    %73 = vector.broadcast %72 : vector<1x8x1xf32> to vector<1x8x8xf32>
    %74 = arith.subf %70, %73 : vector<1x8x8xf32>
    %75 = math.exp %74 : vector<1x8x8xf32>
    %cst_26 = arith.constant dense<0.000000e+00> : vector<1x8xf32>
    %76 = vector.multi_reduction <add>, %75, %cst_26 [2] : vector<1x8x8xf32> to vector<1x8xf32>
    %77 = vector.shape_cast %76 : vector<1x8xf32> to vector<1x8x1xf32>
    "tpu.trace_start"() <{level = 10 : i32, message = "bqk,bkd->bqd"}> : () -> ()
    %cst_27 = arith.constant dense<0.000000e+00> : vector<1x8x8xf32>
    %78 = tpu.matmul %75, %69, %cst_27 {dimension_numbers = #tpu.dot_dimension_numbers<[2], [1], [1], [2], [0, 0, 0, 1, 1, 2], [0], [0]>} : vector<1x8x8xf32>, vector<1x8x8xf32>, vector<1x8x8xf32> -> vector<1x8x8xf32>
    "tpu.trace_stop"() : () -> ()
    %79 = tpu.reciprocal %77 : vector<1x8x1xf32> -> vector<1x8x1xf32>
    %80 = vector.broadcast %79 : vector<1x8x1xf32> to vector<1x8x8xf32>
    %81 = arith.mulf %78, %80 : vector<1x8x8xf32>
    %82 = vector.shape_cast %81 : vector<1x8x8xf32> to vector<8x8xf32>
    %83 = vector.extract_strided_slice %8 {offsets = [24, 0], sizes = [8, 32], strides = [1, 1]} : vector<32x32xf32> to vector<8x32xf32>
    %cst_28 = arith.constant dense<0.000000e+00> : vector<8x32xf32>
    %84 = tpu.matmul %82, %83, %cst_28 {dimension_numbers = #tpu.dot_dimension_numbers<[1], [0], [0], [1], [0, 0, 1, 1], [], []>} : vector<8x8xf32>, vector<8x32xf32>, vector<8x32xf32> -> vector<8x32xf32>
    %85 = arith.addf %66, %84 : vector<8x32xf32>
    %c0_29 = arith.constant 0 : index
    %c0_30 = arith.constant 0 : index
    %86 = vector.load %arg5[%c0_29, %c0_30] : memref<1x32xf32, #tpu.memory_space<vmem>>, vector<1x32xf32>
    %87 = vector.broadcast %86 : vector<1x32xf32> to vector<8x32xf32>
    %88 = arith.addf %85, %87 : vector<8x32xf32>
    %89 = vector.shape_cast %88 : vector<8x32xf32> to vector<1x8x32xf32>
    %c0_31 = arith.constant 0 : index
    %c0_32 = arith.constant 0 : index
    %c0_33 = arith.constant 0 : index
    %90 = vector.load %arg6[%c0_31, %c0_32, %c0_33] : memref<1x8x32xf32, #tpu.memory_space<vmem>>, vector<1x8x32xf32>
    tpu.vector_store %arg6[%c0_31, %c0_32, %c0_33], %89 {strides = array<i32>} : memref<1x8x32xf32, #tpu.memory_space<vmem>>, vector<1x8x32xf32>,
    return
  }
  func.func @transform_0(%arg0: i32) -> (i32, i32, i32) {
    %c0_i32 = arith.constant 0 : i32
    %c0_i32_0 = arith.constant 0 : i32
    %c0_i32_1 = arith.constant 0 : i32
    return %arg0, %c0_i32, %c0_i32_0 : i32, i32, i32
  }
  func.func @transform_1(%arg0: i32) -> (i32, i32) {
    %c0_i32 = arith.constant 0 : i32
    %c0_i32_0 = arith.constant 0 : i32
    %c0_i32_1 = arith.constant 0 : i32
    return %c0_i32, %c0_i32_0 : i32, i32
  }
  func.func @transform_2(%arg0: i32) -> (i32, i32) {
    %c0_i32 = arith.constant 0 : i32
    %c0_i32_0 = arith.constant 0 : i32
    %c0_i32_1 = arith.constant 0 : i32
    return %c0_i32, %c0_i32_0 : i32, i32
  }
  func.func @transform_3(%arg0: i32) -> (i32, i32) {
    %c0_i32 = arith.constant 0 : i32
    %c0_i32_0 = arith.constant 0 : i32
    %c0_i32_1 = arith.constant 0 : i32
    return %c0_i32, %c0_i32_0 : i32, i32
  }
  func.func @transform_4(%arg0: i32) -> (i32, i32) {
    %c0_i32 = arith.constant 0 : i32
    %c0_i32_0 = arith.constant 0 : i32
    %c0_i32_1 = arith.constant 0 : i32
    return %c0_i32, %c0_i32_0 : i32, i32
  }
  func.func @transform_5(%arg0: i32) -> (i32, i32, i32) {
    %c0_i32 = arith.constant 0 : i32
    %c0_i32_0 = arith.constant 0 : i32
    %c0_i32_1 = arith.constant 0 : i32
    return %arg0, %c0_i32, %c0_i32_0 : i32, i32, i32
  }
}

</mosaic_0001>

<llo_original>
// kernel: tpu_custom_call.1
$region0: #{tpu_custom_call.1}
  #allocation0 [shape = 'u32[]', space=smem, size = 0x4, offset = 0x4, fixed_abs, tag = 'smem constant byte address 0x4 - core index']
  #allocation1 [shape = 'u32[144,128]{1,0:T(1,128)}', space=vmem, size = 0x12000, scoped, tag = 'internal scratch']
  %s0 = inlined_call_operand.hbm [shape: f32[2,8,96], index: 0, kind: input, shape index: {}]
  %s1 = inlined_call_operand.hbm [shape: f32[96,96], index: 1, kind: input, shape index: {}]
  %s2 = inlined_call_operand.vmem [shape: f32[1,96], index: 2, kind: input, shape index: {}]
  %s3 = inlined_call_operand.hbm [shape: f32[32,32], index: 3, kind: input, shape index: {}]
  %s4 = inlined_call_operand.vmem [shape: f32[1,32], index: 4, kind: input, shape index: {}]
  %s5 = inlined_call_operand.hbm [shape: f32[2,8,32], index: 5, kind: output, shape index: {}]
  %s6 = sld [smem:[#allocation0]]
  $region65: #{tpu_custom_call.1} parent=0
    _
  %s8 = ssub.s32 1, %s6
  %s9 = scalar_select 0, %s8, %s6
  $region1: #{tpu_custom_call.1} parent=0
    #allocation2 [shape = 'u8[8192]{0}', space=vmem, size = 0x2000, scoped, tag = 'input window, operand 0']
    #allocation3 [shape = 's32[2]{0}', space=sflag, size = 0x8, scoped, tag = 'scoped memory for tpu_custom_call.1']
    #allocation4 [shape = 's32[2]{0}', space=sflag, size = 0x8, scoped, tag = 'scoped memory for tpu_custom_call.1']
    #allocation5 [shape = 'u8[49152]{0}', space=vmem, size = 0xc000, scoped, tag = 'input window, operand 1, single buffered']
    #allocation6 [shape = 's32[1]{0}', space=sflag, size = 0x4, scoped, tag = 'scoped memory for tpu_custom_call.1']
    #allocation7 [shape = 'u8[16384]{0}', space=vmem, size = 0x4000, scoped, tag = 'input window, operand 3, single buffered']
    #allocation8 [shape = 'u8[8192]{0}', space=vmem, size = 0x2000, scoped, tag = 'output window, operand 0']
    %10 = vsyncpa [#allocation3], 0
    %s11 = scalar_lea.sflag [#allocation3], 1
    %12 = vsyncpa %s11, 0
    %13 = vsyncpa [#allocation6], 0
    %14 = vsyncpa [#allocation4], 0
    %s15 = scalar_lea.sflag [#allocation4], 1
    %16 = vsyncpa %s15, 0
    loop: start=0, step=1, limit=4
    $region2: #{tpu_custom_call.1} parent=1 // loop_pre_header
      _
    $region3: #{tpu_custom_call.1} parent=1 // loop_header
      %s18 = sphi 0, %s22
      %p19 = scmp.ge.s32.totalorder %s18, 4
      %s28 = sphi 0, %s30
      %s31 = sphi 0, %s28
      %s32 = sphi 0, %s31
      %s48 = sphi 0, %s32
      %s52 = sphi 0, %s52
      %s54 = sphi 0, %s52
      %s55 = sphi 0, %s54
      %s69 = sphi 0, %s55
      %s73 = sphi 0, %s73
      %s75 = sphi 0, %s73
      %s76 = sphi 0, %s75
      %s90 = sphi 0, %s76
      %s94 = sphi 0, %s94
      %s96 = sphi 0, %s94
      %s97 = sphi 0, %s96
      %s111 = sphi 0, %s97
      %s115 = sphi 0, %s115
      %s117 = sphi 0, %s115
      %s118 = sphi 0, %s117
      %s132 = sphi 0, %s118
      %s138 = sphi 0, %s140
      %s141 = sphi 0, %s138
      %s142 = sphi 0, %s141
      %s158 = sphi 0, %s142
    $region4: #{tpu_custom_call.1} parent=1 // loop_header_branch
      %21 = sbr.rel (%p19) target = $region8
    $region5: #{tpu_custom_call.1} parent=1 // loop_body
      %s23 = ssub.s32 %s18, 1
      %s24 = ssub.s32 %s18, 2
      %s25 = sadd.s32 %s18, 1
      %s26 = ssub.s32 %s18, %s25
      %p27 = scmp.eq.s32.totalorder %s26, 0
      %s29 = sadd.s32 %s28, 1
      %s30 = scalar_select %p27, %s28, %s29
      %p33 = pneg %p27
      %p34 = scmp.eq.s32.totalorder %s18, 1
      %p35 = por %p33, %p34
      %p36 = scmp.ne.s32.totalorder %s28, %s31
      %p37 = scmp.eq.s32.totalorder %s18, 0
      %p38 = por %p36, %p37
      %p39 = scmp.ne.s32.totalorder %s28, %s31
      %p40 = scmp.eq.s32.totalorder %s23, 1
      %p41 = por %p39, %p40
      %p42 = scmp.ne.s32.totalorder %s31, %s32
      %p43 = scmp.eq.s32.totalorder %s23, 0
      %p44 = por %p42, %p43
      %p45 = scmp.ne.s32.totalorder %s31, %s32
      %p46 = scmp.eq.s32.totalorder %s24, 1
      %p47 = por %p45, %p46
      %p49 = scmp.ne.s32.totalorder %s32, %s48
      %p50 = scmp.eq.s32.totalorder %s24, 0
      %p51 = por %p49, %p50
      %s53 = sadd.s32 %s52, 1
      %p56 = scmp.eq.s32.totalorder %s18, 1
      %p57 = scmp.ne.s32.totalorder %s52, %s54
      %p58 = scmp.eq.s32.totalorder %s18, 0
      %p59 = por %p57, %p58
      %p60 = scmp.ne.s32.totalorder %s52, %s54
      %p61 = scmp.eq.s32.totalorder %s23, 1
      %p62 = por %p60, %p61
      %p63 = scmp.ne.s32.totalorder %s54, %s55
      %p64 = scmp.eq.s32.totalorder %s23, 0
      %p65 = por %p63, %p64
      %p66 = scmp.ne.s32.totalorder %s54, %s55
      %p67 = scmp.eq.s32.totalorder %s24, 1
      %p68 = por %p66, %p67
      %p70 = scmp.ne.s32.totalorder %s55, %s69
      %p71 = scmp.eq.s32.totalorder %s24, 0
      %p72 = por %p70, %p71
      %s74 = sadd.s32 %s73, 1
      %p77 = scmp.eq.s32.totalorder %s18, 1
      %p78 = scmp.ne.s32.totalorder %s73, %s75
      %p79 = scmp.eq.s32.totalorder %s18, 0
      %p80 = por %p78, %p79
      %p81 = scmp.ne.s32.totalorder %s73, %s75
      %p82 = scmp.eq.s32.totalorder %s23, 1
      %p83 = por %p81, %p82
      %p84 = scmp.ne.s32.totalorder %s75, %s76
      %p85 = scmp.eq.s32.totalorder %s23, 0
      %p86 = por %p84, %p85
      %p87 = scmp.ne.s32.totalorder %s75, %s76
      %p88 = scmp.eq.s32.totalorder %s24, 1
      %p89 = por %p87, %p88
      %p91 = scmp.ne.s32.totalorder %s76, %s90
      %p92 = scmp.eq.s32.totalorder %s24, 0
      %p93 = por %p91, %p92
      %s95 = sadd.s32 %s94, 1
      %p98 = scmp.eq.s32.totalorder %s18, 1
      %p99 = scmp.ne.s32.totalorder %s94, %s96
      %p100 = scmp.eq.s32.totalorder %s18, 0
      %p101 = por %p99, %p100
      %p102 = scmp.ne.s32.totalorder %s94, %s96
      %p103 = scmp.eq.s32.totalorder %s23, 1
      %p104 = por %p102, %p103
      %p105 = scmp.ne.s32.totalorder %s96, %s97
      %p106 = scmp.eq.s32.totalorder %s23, 0
      %p107 = por %p105, %p106
      %p108 = scmp.ne.s32.totalorder %s96, %s97
      %p109 = scmp.eq.s32.totalorder %s24, 1
      %p110 = por %p108, %p109
      %p112 = scmp.ne.s32.totalorder %s97, %s111
      %p113 = scmp.eq.s32.totalorder %s24, 0
      %p114 = por %p112, %p113
      %s116 = sadd.s32 %s115, 1
      %p119 = scmp.eq.s32.totalorder %s18, 1
      %p120 = scmp.ne.s32.totalorder %s115, %s117
      %p121 = scmp.eq.s32.totalorder %s18, 0
      %p122 = por %p120, %p121
      %p123 = scmp.ne.s32.totalorder %s115, %s117
      %p124 = scmp.eq.s32.totalorder %s23, 1
      %p125 = por %p123, %p124
      %p126 = scmp.ne.s32.totalorder %s117, %s118
      %p127 = scmp.eq.s32.totalorder %s23, 0
      %p128 = por %p126, %p127
      %p129 = scmp.ne.s32.totalorder %s117, %s118
      %p130 = scmp.eq.s32.totalorder %s24, 1
      %p131 = por %p129, %p130
      %p133 = scmp.ne.s32.totalorder %s118, %s132
      %p134 = scmp.eq.s32.totalorder %s24, 0
      %p135 = por %p133, %p134
      %s136 = ssub.s32 %s18, %s25
      %p137 = scmp.eq.s32.totalorder %s136, 0
      %s139 = sadd.s32 %s138, 1
      %s140 = scalar_select %p137, %s138, %s139
      %p143 = pneg %p137
      %p144 = scmp.eq.s32.totalorder %s18, 1
      %p145 = por %p143, %p144
      %p146 = scmp.ne.s32.totalorder %s138, %s141
      %p147 = scmp.eq.s32.totalorder %s18, 0
      %p148 = por %p146, %p147
      %p149 = scmp.ne.s32.totalorder %s138, %s141
      %p150 = scmp.eq.s32.totalorder %s23, 1
      %p151 = por %p149, %p150
      %p152 = scmp.ne.s32.totalorder %s141, %s142
      %p153 = scmp.eq.s32.totalorder %s23, 0
      %p154 = por %p152, %p153
      %p155 = scmp.ne.s32.totalorder %s141, %s142
      %p156 = scmp.eq.s32.totalorder %s24, 1
      %p157 = por %p155, %p156
      %p159 = scmp.ne.s32.totalorder %s142, %s158
      %p160 = scmp.eq.s32.totalorder %s24, 0
      %p161 = por %p159, %p160
      %p162 = scmp.le.s32.totalorder 1, %s18
      %p163 = scmp.lt.s32.totalorder %s18, 3
      %p164 = pnand %p162, %p163
      %p165 = pneg %p164
      // Predicated region
      $region9: #{tpu_custom_call.1} parent=5 // pred_check
        _
      $region10: #{tpu_custom_call.1} parent=5 // pred_check_branch
        %167 = sbr.rel (%p164) target = $region12
      $region11: #{tpu_custom_call.1} parent=5 // pred_region
        %s168 = ssub.s32 %s18, 1
        // Predicated region
        $region13: #{tpu_custom_call.1} parent=11 // pred_check
          %p169 = pneg %p65
        $region14: #{tpu_custom_call.1} parent=11 // pred_check_branch
          %171 = sbr.rel (%p169) target = $region16
        $region15: #{tpu_custom_call.1} parent=11 // pred_region
          %s173 = ssub.s32 1536, 1536
          %174 = vsyncadd [#allocation6], %s173
          %s175 = sshll.u32 [#allocation5], 4
          %s176 = int_to_ptr.vmem [resolvable:$true] %s175
          %181 = dma.hbm_to_vmem [thread:$0]  %s1, 1536, %s176, [#allocation6], 128, 128, 8
        $region16: #{tpu_custom_call.1} parent=11 // pred_fallthru
          _
        // Predicated region
        $region17: #{tpu_custom_call.1} parent=11 // pred_check
          %p182 = pneg %p86
        $region18: #{tpu_custom_call.1} parent=11 // pred_check_branch
          %184 = sbr.rel (%p182) target = $region20
        $region19: #{tpu_custom_call.1} parent=11 // pred_region
          _
        $region20: #{tpu_custom_call.1} parent=11 // pred_fallthru
          _
        // Predicated region
        $region21: #{tpu_custom_call.1} parent=11 // pred_check
          %p185 = pneg %p107
        $region22: #{tpu_custom_call.1} parent=11 // pred_check_branch
          %187 = sbr.rel (%p185) target = $region24
        $region23: #{tpu_custom_call.1} parent=11 // pred_region
          %s189 = ssub.s32 512, 512
          %190 = vsyncadd [#allocation6], %s189
          %s191 = sshll.u32 [#allocation7], 4
          %s192 = int_to_ptr.vmem [resolvable:$true] %s191
          %197 = dma.hbm_to_vmem [thread:$0]  %s3, 512, %s192, [#allocation6], 128, 128, 8
        $region24: #{tpu_custom_call.1} parent=11 // pred_fallthru
          _
        // Predicated region
        $region25: #{tpu_custom_call.1} parent=11 // pred_check
          %p198 = pneg %p128
        $region26: #{tpu_custom_call.1} parent=11 // pred_check_branch
          %200 = sbr.rel (%p198) target = $region28
        $region27: #{tpu_custom_call.1} parent=11 // pred_region
          _
        $region28: #{tpu_custom_call.1} parent=11 // pred_fallthru
          _
      $region12: #{tpu_custom_call.1} parent=5 // pred_fallthru
        _
      %p201 = scmp.lt.s32.totalorder %s18, 2
      // Predicated region
      $region29: #{tpu_custom_call.1} parent=5 // pred_check
        %p202 = pneg %p201
      $region30: #{tpu_custom_call.1} parent=5 // pred_check_branch
        %204 = sbr.rel (%p202) target = $region32
      $region31: #{tpu_custom_call.1} parent=5 // pred_region
        // Predicated region
        $region33: #{tpu_custom_call.1} parent=31 // pred_check
          %p205 = pneg %p38
        $region34: #{tpu_custom_call.1} parent=31 // pred_check_branch
          %207 = sbr.rel (%p205) target = $region36
        $region35: #{tpu_custom_call.1} parent=31 // pred_region
          %s208 = sand.u32 %s28, 1
          %s209 = scalar_lea.sflag [#allocation3], %s208
          %s210 = sand.u32 %s28, 1
          %s211 = smul.addr %s210, 8
          %s212 = scalar_lea.vmem [#allocation2], %s211
          %s214 = ssub.s32 128, 128
          %215 = vsyncadd %s209, %s214
          %s216 = smul.addr %s18, 128
          %s217 = scalar_lea.hbm %s0, %s216
          %s219 = sshll.u32 %s212, 4
          %s220 = int_to_ptr.vmem [resolvable:$true] %s219
          %222 = dma.hbm_to_vmem [thread:$0]  %s217, 128, %s220, %s209
        $region36: #{tpu_custom_call.1} parent=31 // pred_fallthru
          _
      $region32: #{tpu_custom_call.1} parent=5 // pred_fallthru
        _
      %p223 = scmp.le.s32.totalorder 1, %s18
      %p224 = scmp.lt.s32.totalorder %s18, 3
      %p225 = pnand %p223, %p224
      %p226 = pneg %p225
      // Predicated region
      $region37: #{tpu_custom_call.1} parent=5 // pred_check
        _
      $region38: #{tpu_custom_call.1} parent=5 // pred_check_branch
        %228 = sbr.rel (%p225) target = $region40
      $region39: #{tpu_custom_call.1} parent=5 // pred_region
        %s229 = ssub.s32 %s18, 1
        %s230 = sand.u32 %s31, 1
        %s231 = scalar_lea.sflag [#allocation3], %s230
        %s232 = sand.u32 %s31, 1
        %s233 = smul.addr %s232, 8
        %s234 = scalar_lea.vmem [#allocation2], %s233
        // Predicated region
        $region41: #{tpu_custom_call.1} parent=39 // pred_check
          %p235 = pneg %p44
        $region42: #{tpu_custom_call.1} parent=39 // pred_check_branch
          %237 = sbr.rel (%p235) target = $region44
        $region43: #{tpu_custom_call.1} parent=39 // pred_region
          %238 = dma.done %s231, 128
        $region44: #{tpu_custom_call.1} parent=39 // pred_fallthru
          _
        // Predicated region
        $region45: #{tpu_custom_call.1} parent=39 // pred_check
          %p239 = pneg %p65
        $region46: #{tpu_custom_call.1} parent=39 // pred_check_branch
          %241 = sbr.rel (%p239) target = $region48
        $region47: #{tpu_custom_call.1} parent=39 // pred_region
          %242 = dma.done [#allocation6], 1536
        $region48: #{tpu_custom_call.1} parent=39 // pred_fallthru
          _
        // Predicated region
        $region49: #{tpu_custom_call.1} parent=39 // pred_check
          %p243 = pneg %p107
        $region50: #{tpu_custom_call.1} parent=39 // pred_check_branch
          %245 = sbr.rel (%p243) target = $region52
        $region51: #{tpu_custom_call.1} parent=39 // pred_region
          %246 = dma.done [#allocation6], 512
        $region52: #{tpu_custom_call.1} parent=39 // pred_fallthru
          _
        %s247 = sand.u32 %s31, 1
        %s248 = scalar_lea.sflag [#allocation3], %s247
        %s249 = sand.u32 %s31, 1
        %s250 = smul.addr %s249, 8
        %s251 = scalar_lea.vmem [#allocation2], %s250
        %p252 = pneg %p44
        %p253 = pneg %p41
        %p254 = pneg %p65
        %p255 = pneg %p62
        %p256 = pneg %p86
        %p257 = pneg %p83
        %p258 = pneg %p107
        %p259 = pneg %p104
        %p260 = pneg %p128
        %p261 = pneg %p125
        %p262 = pneg %p154
        %p263 = pneg %p151
        %s264 = sand.u32 %s141, 1
        %s265 = scalar_lea.sflag [#allocation4], %s264
        %s266 = sand.u32 %s141, 1
        %s267 = smul.addr %s266, 8
        %s268 = scalar_lea.vmem [#allocation8], %s267
        %v269 = vld [vmem:[%s234] sm:$0xff]
        %v270 = vld [vmem:[#allocation5] sm:$0xff]
        %v271 = vld [vmem:[#allocation5 + $0x8] sm:$0xff]
        %v272 = vld [vmem:[#allocation5 + $0x10] sm:$0xff]
        %v273 = vld [vmem:[#allocation5 + $0x18] sm:$0xff]
        %v274 = vld [vmem:[#allocation5 + $0x20] sm:$0xff]
        %v275 = vld [vmem:[#allocation5 + $0x28] sm:$0xff]
        %v276 = vld [vmem:[#allocation5 + $0x30] sm:$0xff]
        %v277 = vld [vmem:[#allocation5 + $0x38] sm:$0xff]
        %v278 = vld [vmem:[#allocation5 + $0x40] sm:$0xff]
        %v279 = vld [vmem:[#allocation5 + $0x48] sm:$0xff]
        %v280 = vld [vmem:[#allocation5 + $0x50] sm:$0xff]
        %v281 = vld [vmem:[#allocation5 + $0x58] sm:$0xff]
        %v282 = vld [vmem:[%s2] sm:$0x1]
        %v284 = vlaneseq
        %v285 = vshrl.u32 %v284, 7
        %v286 = vsub.s32 0, %v285
        %v287 = vrot.slane %v282, %v286
        %vm289 = vcmask 785408
        %v291 = vsel %vm289, %v269, 0
        %293 = vmatprep.subr.mxu0 0.0
        %294 = vmatpush1.msra.mxu0 %v270
        %295 = vmatprep.subr.mxu0 0.0
        %296 = vmatpush1.msra.mxu0 %v271
        %297 = vmatprep.subr.mxu0 0.0
        %298 = vmatpush1.msra.mxu0 %v272
        %299 = vmatprep.subr.mxu0 0.0
        %300 = vmatpush1.msra.mxu0 %v273
        %301 = vmatprep.subr.mxu0 0.0
        %302 = vmatpush1.msra.mxu0 %v274
        %303 = vmatprep.subr.mxu0 0.0
        %304 = vmatpush1.msra.mxu0 %v275
        %305 = vmatprep.subr.mxu0 0.0
        %306 = vmatpush1.msra.mxu0 %v276
        %307 = vmatprep.subr.mxu0 0.0
        %308 = vmatpush1.msra.mxu0 %v277
        %309 = vmatprep.subr.mxu0 0.0
        %310 = vmatpush1.msra.mxu0 %v278
        %311 = vmatprep.subr.mxu0 0.0
        %312 = vmatpush1.msra.mxu0 %v279
        %313 = vmatprep.subr.mxu0 0.0
        %314 = vmatpush1.msra.mxu0 %v280
        %315 = vmatprep.subr.mxu0 0.0
        %316 = vmatpush1.msra.mxu0 %v281
        %317 = vmatprep.subr.mxu0 0.0
        %318 = vmatpush1.msra.mxu0 0.0
        %319 = vmatprep.subr.mxu0 0.0
        %320 = vmatpush1.msra.mxu0 0.0
        %321 = vmatprep.subr.mxu0 0.0
        %322 = vmatpush1.msra.mxu0 0.0
        %323 = vmatprep.subr.mxu0 0.0
        %324 = vmatpush1.msra.mxu0 0.0
        %325 = vmatprep.subr.mxu0 0.0
        %326 = vmatpush1.msra.mxu0 0.0
        %327 = vmatprep.subr.mxu0 0.0
        %328 = vmatpush1.msra.mxu0 0.0
        %329 = vmatprep.subr.mxu0 0.0
        %330 = vmatpush1.msra.mxu0 0.0
        %331 = vmatprep.subr.mxu0 0.0
        %332 = vmatpush1.msra.mxu0 0.0
        %333 = vmatprep.subr.mxu0 0.0
        %334 = vmatpush1.msra.mxu0 0.0
        %335 = vmatprep.subr.mxu0 0.0
        %336 = vmatpush1.msra.mxu0 0.0
        %337 = vmatprep.subr.mxu0 0.0
        %338 = vmatpush1.msra.mxu0 0.0
        %339 = vmatprep.subr.mxu0 0.0
        %340 = vmatpush1.msra.mxu0 0.0
        %341 = vmatprep.subr.mxu0 0.0
        %342 = vmatpush1.msra.mxu0 0.0
        %343 = vmatprep.subr.mxu0 0.0
        %344 = vmatpush1.msra.mxu0 0.0
        %345 = vmatprep.subr.mxu0 0.0
        %346 = vmatpush1.msra.mxu0 0.0
        %347 = vmatprep.subr.mxu0 0.0
        %348 = vmatpush1.msra.mxu0 0.0
        %349 = vmatprep.subr.mxu0 0.0
        %350 = vmatpush1.msra.mxu0 0.0
        %351 = vmatprep.subr.mxu0 0.0
        %352 = vmatpush1.msra.mxu0 0.0
        %353 = vmatprep.subr.mxu0 0.0
        %354 = vmatpush1.msra.mxu0 0.0
        %355 = vmatprep.subr.mxu0 0.0
        %356 = vmatpush1.msra.mxu0 0.0
        %357 = vmatprep.mubr.f32.mxu0 0.0
        %358 = vmatmul.mubr.f32.gmra.mrb[0].mxu0 %v291
        %v359 = vpop.f32.mrb[0].mxu0
        %v360 = vadd.f32 %v287, %v359
        %v361 = vpop.f32.mrb[0].mxu0
        %362 = vdwg.mxu0
        %v363 = vld [vmem:[#allocation7] sm:$0xff]
        %v364 = vld [vmem:[#allocation7 + $0x8] sm:$0xff]
        %v365 = vld [vmem:[#allocation7 + $0x10] sm:$0xff]
        %v366 = vld [vmem:[#allocation7 + $0x18] sm:$0xff]
        %368 = vrot.lane.b32.xlu0 %v360, 96
        %v369 = vpop.permute.xlu0 %368
        %vm370 = vcmask 64512
        %v371 = vsel %vm370, %v360, 0
        %v373 = vsel %vm370, %v369, 0
        %375 = vmatprep.subr.mxu0 0.0
        %376 = vmatpush1.xpose.msra.mxu0 %v373
        %377 = vmatprep.subr.mxu0 0.0
        %378 = vmatpush1.xpose.msra.mxu0 0.0
        %379 = vmatprep.subr.mxu0 0.0
        %380 = vmatpush1.xpose.msra.mxu0 0.0
        %381 = vmatprep.subr.mxu0 0.0
        %382 = vmatpush1.xpose.msra.mxu0 0.0
        %383 = vmatprep.subr.mxu0 0.0
        %384 = vmatpush1.xpose.msra.mxu0 0.0
        %385 = vmatprep.subr.mxu0 0.0
        %386 = vmatpush1.xpose.msra.mxu0 0.0
        %387 = vmatprep.subr.mxu0 0.0
        %388 = vmatpush1.xpose.msra.mxu0 0.0
        %389 = vmatprep.subr.mxu0 0.0
        %390 = vmatpush1.xpose.msra.mxu0 0.0
        %391 = vmatprep.subr.mxu0 0.0
        %392 = vmatpush1.xpose.msra.mxu0 0.0
        %393 = vmatprep.subr.mxu0 0.0
        %394 = vmatpush1.xpose.msra.mxu0 0.0
        %395 = vmatprep.subr.mxu0 0.0
        %396 = vmatpush1.xpose.msra.mxu0 0.0
        %397 = vmatprep.subr.mxu0 0.0
        %398 = vmatpush1.xpose.msra.mxu0 0.0
        %399 = vmatprep.subr.mxu0 0.0
        %400 = vmatpush1.xpose.msra.mxu0 0.0
        %401 = vmatprep.subr.mxu0 0.0
        %402 = vmatpush1.xpose.msra.mxu0 0.0
        %403 = vmatprep.subr.mxu0 0.0
        %404 = vmatpush1.xpose.msra.mxu0 0.0
        %405 = vmatprep.subr.mxu0 0.0
        %406 = vmatpush1.xpose.msra.mxu0 0.0
        %407 = vmatprep.subr.mxu0 0.0
        %408 = vmatpush1.xpose.msra.mxu0 0.0
        %409 = vmatprep.subr.mxu0 0.0
        %410 = vmatpush1.xpose.msra.mxu0 0.0
        %411 = vmatprep.subr.mxu0 0.0
        %412 = vmatpush1.xpose.msra.mxu0 0.0
        %413 = vmatprep.subr.mxu0 0.0
        %414 = vmatpush1.xpose.msra.mxu0 0.0
        %415 = vmatprep.subr.mxu0 0.0
        %416 = vmatpush1.xpose.msra.mxu0 0.0
        %417 = vmatprep.subr.mxu0 0.0
        %418 = vmatpush1.xpose.msra.mxu0 0.0
        %419 = vmatprep.subr.mxu0 0.0
        %420 = vmatpush1.xpose.msra.mxu0 0.0
        %421 = vmatprep.subr.mxu0 0.0
        %422 = vmatpush1.xpose.msra.mxu0 0.0
        %423 = vmatprep.subr.mxu0 0.0
        %424 = vmatpush1.xpose.msra.mxu0 0.0
        %425 = vmatprep.subr.mxu0 0.0
        %426 = vmatpush1.xpose.msra.mxu0 0.0
        %427 = vmatprep.subr.mxu0 0.0
        %428 = vmatpush1.xpose.msra.mxu0 0.0
        %429 = vmatprep.subr.mxu0 0.0
        %430 = vmatpush1.xpose.msra.mxu0 0.0
        %431 = vmatprep.subr.mxu0 0.0
        %432 = vmatpush1.xpose.msra.mxu0 0.0
        %433 = vmatprep.subr.mxu0 0.0
        %434 = vmatpush1.xpose.msra.mxu0 0.0
        %435 = vmatprep.subr.mxu0 0.0
        %436 = vmatpush1.xpose.msra.mxu0 0.0
        %437 = vmatprep.subr.mxu0 0.0
        %438 = vmatpush1.xpose.msra.mxu0 0.0
        %439 = vmatprep.mubr.f32.mxu0 0.0
        %440 = vmatmul.mubr.f32.gmra.mrb[0].mxu0 %v371
        %v441 = vpop.f32.mrb[0].mxu0
        %v442 = vadd.f32 0.0, %v441
        %v443 = vpop.f32.mrb[0].mxu0
        %444 = vdwg.mxu0
        %v445 = vsel %vm370, %v442, -inf
        %446 = vmax.xlane.f32.xlu0 %v445
        %v447 = vpop.xlane.xlu0 %446
        %v448 = vsub.f32 %v442, %v447
        %v449 = vmul.f32 %v448, 1.442695
        %v450 = vpow.pop %v449
        %v451 = vsel %vm370, %v450, 0.0
        %452 = vadd.xlane.f32.xlu0 %v451
        %v453 = vpop.xlane.xlu0 %452
        %454 = vrot.lane.b32.xlu0 %v360, 64
        %v455 = vpop.permute.xlu0 %454
        %v458 = vsel %vm370, %v450, 0
        %460 = vmatprep.subr.mxu0 0.0
        %461 = vmatpush1.msra.mxu0 %v455
        %462 = vmatprep.subr.mxu0 0.0
        %463 = vmatpush1.msra.mxu0 0.0
        %464 = vmatprep.subr.mxu0 0.0
        %465 = vmatpush1.msra.mxu0 0.0
        %466 = vmatprep.subr.mxu0 0.0
        %467 = vmatpush1.msra.mxu0 0.0
        %468 = vmatprep.subr.mxu0 0.0
        %469 = vmatpush1.msra.mxu0 0.0
        %470 = vmatprep.subr.mxu0 0.0
        %471 = vmatpush1.msra.mxu0 0.0
        %472 = vmatprep.subr.mxu0 0.0
        %473 = vmatpush1.msra.mxu0 0.0
        %474 = vmatprep.subr.mxu0 0.0
        %475 = vmatpush1.msra.mxu0 0.0
        %476 = vmatprep.subr.mxu0 0.0
        %477 = vmatpush1.msra.mxu0 0.0
        %478 = vmatprep.subr.mxu0 0.0
        %479 = vmatpush1.msra.mxu0 0.0
        %480 = vmatprep.subr.mxu0 0.0
        %481 = vmatpush1.msra.mxu0 0.0
        %482 = vmatprep.subr.mxu0 0.0
        %483 = vmatpush1.msra.mxu0 0.0
        %484 = vmatprep.subr.mxu0 0.0
        %485 = vmatpush1.msra.mxu0 0.0
        %486 = vmatprep.subr.mxu0 0.0
        %487 = vmatpush1.msra.mxu0 0.0
        %488 = vmatprep.subr.mxu0 0.0
        %489 = vmatpush1.msra.mxu0 0.0
        %490 = vmatprep.subr.mxu0 0.0
        %491 = vmatpush1.msra.mxu0 0.0
        %492 = vmatprep.subr.mxu0 0.0
        %493 = vmatpush1.msra.mxu0 0.0
        %494 = vmatprep.subr.mxu0 0.0
        %495 = vmatpush1.msra.mxu0 0.0
        %496 = vmatprep.subr.mxu0 0.0
        %497 = vmatpush1.msra.mxu0 0.0
        %498 = vmatprep.subr.mxu0 0.0
        %499 = vmatpush1.msra.mxu0 0.0
        %500 = vmatprep.subr.mxu0 0.0
        %501 = vmatpush1.msra.mxu0 0.0
        %502 = vmatprep.subr.mxu0 0.0
        %503 = vmatpush1.msra.mxu0 0.0
        %504 = vmatprep.subr.mxu0 0.0
        %505 = vmatpush1.msra.mxu0 0.0
        %506 = vmatprep.subr.mxu0 0.0
        %507 = vmatpush1.msra.mxu0 0.0
        %508 = vmatprep.subr.mxu0 0.0
        %509 = vmatpush1.msra.mxu0 0.0
        %510 = vmatprep.subr.mxu0 0.0
        %511 = vmatpush1.msra.mxu0 0.0
        %512 = vmatprep.subr.mxu0 0.0
        %513 = vmatpush1.msra.mxu0 0.0
        %514 = vmatprep.subr.mxu0 0.0
        %515 = vmatpush1.msra.mxu0 0.0
        %516 = vmatprep.subr.mxu0 0.0
        %517 = vmatpush1.msra.mxu0 0.0
        %518 = vmatprep.subr.mxu0 0.0
        %519 = vmatpush1.msra.mxu0 0.0
        %520 = vmatprep.subr.mxu0 0.0
        %521 = vmatpush1.msra.mxu0 0.0
        %522 = vmatprep.subr.mxu0 0.0
        %523 = vmatpush1.msra.mxu0 0.0
        %524 = vmatprep.mubr.f32.mxu0 0.0
        %525 = vmatmul.mubr.f32.gmra.mrb[0].mxu0 %v458
        %v526 = vpop.f32.mrb[0].mxu0
        %v527 = vadd.f32 0.0, %v526
        %v528 = vpop.f32.mrb[0].mxu0
        %529 = vdwg.mxu0
        %v530 = vrcp.pop %v453
        %v531 = vmul.f32 %v527, %v530
        %532 = vrot.lane.b32.xlu0 %v360, 120
        %v533 = vpop.permute.xlu0 %532
        %534 = vrot.lane.b32.xlu0 %v360, 88
        %v535 = vpop.permute.xlu0 %534
        %v536 = vsel %vm370, %v533, 0
        %v538 = vsel %vm370, %v535, 0
        %540 = vmatprep.subr.mxu0 0.0
        %541 = vmatpush1.xpose.msra.mxu0 %v538
        %542 = vmatprep.subr.mxu0 0.0
        %543 = vmatpush1.xpose.msra.mxu0 0.0
        %544 = vmatprep.subr.mxu0 0.0
        %545 = vmatpush1.xpose.msra.mxu0 0.0
        %546 = vmatprep.subr.mxu0 0.0
        %547 = vmatpush1.xpose.msra.mxu0 0.0
        %548 = vmatprep.subr.mxu0 0.0
        %549 = vmatpush1.xpose.msra.mxu0 0.0
        %550 = vmatprep.subr.mxu0 0.0
        %551 = vmatpush1.xpose.msra.mxu0 0.0
        %552 = vmatprep.subr.mxu0 0.0
        %553 = vmatpush1.xpose.msra.mxu0 0.0
        %554 = vmatprep.subr.mxu0 0.0
        %555 = vmatpush1.xpose.msra.mxu0 0.0
        %556 = vmatprep.subr.mxu0 0.0
        %557 = vmatpush1.xpose.msra.mxu0 0.0
        %558 = vmatprep.subr.mxu0 0.0
        %559 = vmatpush1.xpose.msra.mxu0 0.0
        %560 = vmatprep.subr.mxu0 0.0
        %561 = vmatpush1.xpose.msra.mxu0 0.0
        %562 = vmatprep.subr.mxu0 0.0
        %563 = vmatpush1.xpose.msra.mxu0 0.0
        %564 = vmatprep.subr.mxu0 0.0
        %565 = vmatpush1.xpose.msra.mxu0 0.0
        %566 = vmatprep.subr.mxu0 0.0
        %567 = vmatpush1.xpose.msra.mxu0 0.0
        %568 = vmatprep.subr.mxu0 0.0
        %569 = vmatpush1.xpose.msra.mxu0 0.0
        %570 = vmatprep.subr.mxu0 0.0
        %571 = vmatpush1.xpose.msra.mxu0 0.0
        %572 = vmatprep.subr.mxu0 0.0
        %573 = vmatpush1.xpose.msra.mxu0 0.0
        %574 = vmatprep.subr.mxu0 0.0
        %575 = vmatpush1.xpose.msra.mxu0 0.0
        %576 = vmatprep.subr.mxu0 0.0
        %577 = vmatpush1.xpose.msra.mxu0 0.0
        %578 = vmatprep.subr.mxu0 0.0
        %579 = vmatpush1.xpose.msra.mxu0 0.0
        %580 = vmatprep.subr.mxu0 0.0
        %581 = vmatpush1.xpose.msra.mxu0 0.0
        %582 = vmatprep.subr.mxu0 0.0
        %583 = vmatpush1.xpose.msra.mxu0 0.0
        %584 = vmatprep.subr.mxu0 0.0
        %585 = vmatpush1.xpose.msra.mxu0 0.0
        %586 = vmatprep.subr.mxu0 0.0
        %587 = vmatpush1.xpose.msra.mxu0 0.0
        %588 = vmatprep.subr.mxu0 0.0
        %589 = vmatpush1.xpose.msra.mxu0 0.0
        %590 = vmatprep.subr.mxu0 0.0
        %591 = vmatpush1.xpose.msra.mxu0 0.0
        %592 = vmatprep.subr.mxu0 0.0
        %593 = vmatpush1.xpose.msra.mxu0 0.0
        %594 = vmatprep.subr.mxu0 0.0
        %595 = vmatpush1.xpose.msra.mxu0 0.0
        %596 = vmatprep.subr.mxu0 0.0
        %597 = vmatpush1.xpose.msra.mxu0 0.0
        %598 = vmatprep.subr.mxu0 0.0
        %599 = vmatpush1.xpose.msra.mxu0 0.0
        %600 = vmatprep.subr.mxu0 0.0
        %601 = vmatpush1.xpose.msra.mxu0 0.0
        %602 = vmatprep.subr.mxu0 0.0
        %603 = vmatpush1.xpose.msra.mxu0 0.0
        %604 = vmatprep.mubr.f32.mxu0 0.0
        %605 = vmatmul.mubr.f32.gmra.mrb[0].mxu0 %v536
        %v606 = vpop.f32.mrb[0].mxu0
        %v607 = vadd.f32 0.0, %v606
        %v608 = vpop.f32.mrb[0].mxu0
        %609 = vdwg.mxu0
        %v610 = vsel %vm370, %v607, -inf
        %611 = vmax.xlane.f32.xlu0 %v610
        %v612 = vpop.xlane.xlu0 %611
        %v613 = vsub.f32 %v607, %v612
        %v614 = vmul.f32 %v613, 1.442695
        %v615 = vpow.pop %v614
        %v616 = vsel %vm370, %v615, 0.0
        %617 = vadd.xlane.f32.xlu0 %v616
        %v618 = vpop.xlane.xlu0 %617
        %619 = vrot.lane.b32.xlu0 %v360, 56
        %v620 = vpop.permute.xlu0 %619
        %v623 = vsel %vm370, %v615, 0
        %625 = vmatprep.subr.mxu0 0.0
        %626 = vmatpush1.msra.mxu0 %v620
        %627 = vmatprep.subr.mxu0 0.0
        %628 = vmatpush1.msra.mxu0 0.0
        %629 = vmatprep.subr.mxu0 0.0
        %630 = vmatpush1.msra.mxu0 0.0
        %631 = vmatprep.subr.mxu0 0.0
        %632 = vmatpush1.msra.mxu0 0.0
        %633 = vmatprep.subr.mxu0 0.0
        %634 = vmatpush1.msra.mxu0 0.0
        %635 = vmatprep.subr.mxu0 0.0
        %636 = vmatpush1.msra.mxu0 0.0
        %637 = vmatprep.subr.mxu0 0.0
        %638 = vmatpush1.msra.mxu0 0.0
        %639 = vmatprep.subr.mxu0 0.0
        %640 = vmatpush1.msra.mxu0 0.0
        %641 = vmatprep.subr.mxu0 0.0
        %642 = vmatpush1.msra.mxu0 0.0
        %643 = vmatprep.subr.mxu0 0.0
        %644 = vmatpush1.msra.mxu0 0.0
        %645 = vmatprep.subr.mxu0 0.0
        %646 = vmatpush1.msra.mxu0 0.0
        %647 = vmatprep.subr.mxu0 0.0
        %648 = vmatpush1.msra.mxu0 0.0
        %649 = vmatprep.subr.mxu0 0.0
        %650 = vmatpush1.msra.mxu0 0.0
        %651 = vmatprep.subr.mxu0 0.0
        %652 = vmatpush1.msra.mxu0 0.0
        %653 = vmatprep.subr.mxu0 0.0
        %654 = vmatpush1.msra.mxu0 0.0
        %655 = vmatprep.subr.mxu0 0.0
        %656 = vmatpush1.msra.mxu0 0.0
        %657 = vmatprep.subr.mxu0 0.0
        %658 = vmatpush1.msra.mxu0 0.0
        %659 = vmatprep.subr.mxu0 0.0
        %660 = vmatpush1.msra.mxu0 0.0
        %661 = vmatprep.subr.mxu0 0.0
        %662 = vmatpush1.msra.mxu0 0.0
        %663 = vmatprep.subr.mxu0 0.0
        %664 = vmatpush1.msra.mxu0 0.0
        %665 = vmatprep.subr.mxu0 0.0
        %666 = vmatpush1.msra.mxu0 0.0
        %667 = vmatprep.subr.mxu0 0.0
        %668 = vmatpush1.msra.mxu0 0.0
        %669 = vmatprep.subr.mxu0 0.0
        %670 = vmatpush1.msra.mxu0 0.0
        %671 = vmatprep.subr.mxu0 0.0
        %672 = vmatpush1.msra.mxu0 0.0
        %673 = vmatprep.subr.mxu0 0.0
        %674 = vmatpush1.msra.mxu0 0.0
        %675 = vmatprep.subr.mxu0 0.0
        %676 = vmatpush1.msra.mxu0 0.0
        %677 = vmatprep.subr.mxu0 0.0
        %678 = vmatpush1.msra.mxu0 0.0
        %679 = vmatprep.subr.mxu0 0.0
        %680 = vmatpush1.msra.mxu0 0.0
        %681 = vmatprep.subr.mxu0 0.0
        %682 = vmatpush1.msra.mxu0 0.0
        %683 = vmatprep.subr.mxu0 0.0
        %684 = vmatpush1.msra.mxu0 0.0
        %685 = vmatprep.subr.mxu0 0.0
        %686 = vmatpush1.msra.mxu0 0.0
        %687 = vmatprep.subr.mxu0 0.0
        %688 = vmatpush1.msra.mxu0 0.0
        %689 = vmatprep.mubr.f32.mxu0 0.0
        %690 = vmatmul.mubr.f32.gmra.mrb[0].mxu0 %v623
        %v691 = vpop.f32.mrb[0].mxu0
        %v692 = vadd.f32 0.0, %v691
        %v693 = vpop.f32.mrb[0].mxu0
        %694 = vdwg.mxu0
        %v695 = vrcp.pop %v618
        %v696 = vmul.f32 %v692, %v695
        %v698 = vsel %vm370, %v696, 0
        %700 = vmatprep.subr.mxu0 0.0
        %701 = vmatpush1.msra.mxu0 %v364
        %702 = vmatprep.subr.mxu0 0.0
        %703 = vmatpush1.msra.mxu0 0.0
        %704 = vmatprep.subr.mxu0 0.0
        %705 = vmatpush1.msra.mxu0 0.0
        %706 = vmatprep.subr.mxu0 0.0
        %707 = vmatpush1.msra.mxu0 0.0
        %708 = vmatprep.subr.mxu0 0.0
        %709 = vmatpush1.msra.mxu0 0.0
        %710 = vmatprep.subr.mxu0 0.0
        %711 = vmatpush1.msra.mxu0 0.0
        %712 = vmatprep.subr.mxu0 0.0
        %713 = vmatpush1.msra.mxu0 0.0
        %714 = vmatprep.subr.mxu0 0.0
        %715 = vmatpush1.msra.mxu0 0.0
        %716 = vmatprep.subr.mxu0 0.0
        %717 = vmatpush1.msra.mxu0 0.0
        %718 = vmatprep.subr.mxu0 0.0
        %719 = vmatpush1.msra.mxu0 0.0
        %720 = vmatprep.subr.mxu0 0.0
        %721 = vmatpush1.msra.mxu0 0.0
        %722 = vmatprep.subr.mxu0 0.0
        %723 = vmatpush1.msra.mxu0 0.0
        %724 = vmatprep.subr.mxu0 0.0
        %725 = vmatpush1.msra.mxu0 0.0
        %726 = vmatprep.subr.mxu0 0.0
        %727 = vmatpush1.msra.mxu0 0.0
        %728 = vmatprep.subr.mxu0 0.0
        %729 = vmatpush1.msra.mxu0 0.0
        %730 = vmatprep.subr.mxu0 0.0
        %731 = vmatpush1.msra.mxu0 0.0
        %732 = vmatprep.subr.mxu0 0.0
        %733 = vmatpush1.msra.mxu0 0.0
        %734 = vmatprep.subr.mxu0 0.0
        %735 = vmatpush1.msra.mxu0 0.0
        %736 = vmatprep.subr.mxu0 0.0
        %737 = vmatpush1.msra.mxu0 0.0
        %738 = vmatprep.subr.mxu0 0.0
        %739 = vmatpush1.msra.mxu0 0.0
        %740 = vmatprep.subr.mxu0 0.0
        %741 = vmatpush1.msra.mxu0 0.0
        %742 = vmatprep.subr.mxu0 0.0
        %743 = vmatpush1.msra.mxu0 0.0
        %744 = vmatprep.subr.mxu0 0.0
        %745 = vmatpush1.msra.mxu0 0.0
        %746 = vmatprep.subr.mxu0 0.0
        %747 = vmatpush1.msra.mxu0 0.0
        %748 = vmatprep.subr.mxu0 0.0
        %749 = vmatpush1.msra.mxu0 0.0
        %750 = vmatprep.subr.mxu0 0.0
        %751 = vmatpush1.msra.mxu0 0.0
        %752 = vmatprep.subr.mxu0 0.0
        %753 = vmatpush1.msra.mxu0 0.0
        %754 = vmatprep.subr.mxu0 0.0
        %755 = vmatpush1.msra.mxu0 0.0
        %756 = vmatprep.subr.mxu0 0.0
        %757 = vmatpush1.msra.mxu0 0.0
        %758 = vmatprep.subr.mxu0 0.0
        %759 = vmatpush1.msra.mxu0 0.0
        %760 = vmatprep.subr.mxu0 0.0
        %761 = vmatpush1.msra.mxu0 0.0
        %762 = vmatprep.subr.mxu0 0.0
        %763 = vmatpush1.msra.mxu0 0.0
        %764 = vmatprep.mubr.f32.mxu0 0.0
        %765 = vmatmul.mubr.f32.gmra.mrb[0].mxu0 %v698
        %v766 = vpop.f32.mrb[0].mxu0
        %v767 = vadd.f32 0.0, %v766
        %v768 = vpop.f32.mrb[0].mxu0
        %769 = vdwg.mxu0
        %v771 = vsel %vm370, %v531, 0
        %773 = vmatprep.subr.mxu0 0.0
        %774 = vmatpush1.msra.mxu0 %v363
        %775 = vmatprep.subr.mxu0 0.0
        %776 = vmatpush1.msra.mxu0 0.0
        %777 = vmatprep.subr.mxu0 0.0
        %778 = vmatpush1.msra.mxu0 0.0
        %779 = vmatprep.subr.mxu0 0.0
        %780 = vmatpush1.msra.mxu0 0.0
        %781 = vmatprep.subr.mxu0 0.0
        %782 = vmatpush1.msra.mxu0 0.0
        %783 = vmatprep.subr.mxu0 0.0
        %784 = vmatpush1.msra.mxu0 0.0
        %785 = vmatprep.subr.mxu0 0.0
        %786 = vmatpush1.msra.mxu0 0.0
        %787 = vmatprep.subr.mxu0 0.0
        %788 = vmatpush1.msra.mxu0 0.0
        %789 = vmatprep.subr.mxu0 0.0
        %790 = vmatpush1.msra.mxu0 0.0
        %791 = vmatprep.subr.mxu0 0.0
        %792 = vmatpush1.msra.mxu0 0.0
        %793 = vmatprep.subr.mxu0 0.0
        %794 = vmatpush1.msra.mxu0 0.0
        %795 = vmatprep.subr.mxu0 0.0
        %796 = vmatpush1.msra.mxu0 0.0
        %797 = vmatprep.subr.mxu0 0.0
        %798 = vmatpush1.msra.mxu0 0.0
        %799 = vmatprep.subr.mxu0 0.0
        %800 = vmatpush1.msra.mxu0 0.0
        %801 = vmatprep.subr.mxu0 0.0
        %802 = vmatpush1.msra.mxu0 0.0
        %803 = vmatprep.subr.mxu0 0.0
        %804 = vmatpush1.msra.mxu0 0.0
        %805 = vmatprep.subr.mxu0 0.0
        %806 = vmatpush1.msra.mxu0 0.0
        %807 = vmatprep.subr.mxu0 0.0
        %808 = vmatpush1.msra.mxu0 0.0
        %809 = vmatprep.subr.mxu0 0.0
        %810 = vmatpush1.msra.mxu0 0.0
        %811 = vmatprep.subr.mxu0 0.0
        %812 = vmatpush1.msra.mxu0 0.0
        %813 = vmatprep.subr.mxu0 0.0
        %814 = vmatpush1.msra.mxu0 0.0
        %815 = vmatprep.subr.mxu0 0.0
        %816 = vmatpush1.msra.mxu0 0.0
        %817 = vmatprep.subr.mxu0 0.0
        %818 = vmatpush1.msra.mxu0 0.0
        %819 = vmatprep.subr.mxu0 0.0
        %820 = vmatpush1.msra.mxu0 0.0
        %821 = vmatprep.subr.mxu0 0.0
        %822 = vmatpush1.msra.mxu0 0.0
        %823 = vmatprep.subr.mxu0 0.0
        %824 = vmatpush1.msra.mxu0 0.0
        %825 = vmatprep.subr.mxu0 0.0
        %826 = vmatpush1.msra.mxu0 0.0
        %827 = vmatprep.subr.mxu0 0.0
        %828 = vmatpush1.msra.mxu0 0.0
        %829 = vmatprep.subr.mxu0 0.0
        %830 = vmatpush1.msra.mxu0 0.0
        %831 = vmatprep.subr.mxu0 0.0
        %832 = vmatpush1.msra.mxu0 0.0
        %833 = vmatprep.subr.mxu0 0.0
        %834 = vmatpush1.msra.mxu0 0.0
        %835 = vmatprep.subr.mxu0 0.0
        %836 = vmatpush1.msra.mxu0 0.0
        %837 = vmatprep.mubr.f32.mxu0 0.0
        %838 = vmatmul.mubr.f32.gmra.mrb[0].mxu0 %v771
        %v839 = vpop.f32.mrb[0].mxu0
        %v840 = vadd.f32 %v767, %v839
        %v841 = vpop.f32.mrb[0].mxu0
        %842 = vdwg.mxu0
        %843 = vrot.lane.b32.xlu0 %v360, 112
        %v844 = vpop.permute.xlu0 %843
        %845 = vrot.lane.b32.xlu0 %v360, 80
        %v846 = vpop.permute.xlu0 %845
        %v847 = vsel %vm370, %v844, 0
        %v849 = vsel %vm370, %v846, 0
        %851 = vmatprep.subr.mxu0 0.0
        %852 = vmatpush1.xpose.msra.mxu0 %v849
        %853 = vmatprep.subr.mxu0 0.0
        %854 = vmatpush1.xpose.msra.mxu0 0.0
        %855 = vmatprep.subr.mxu0 0.0
        %856 = vmatpush1.xpose.msra.mxu0 0.0
        %857 = vmatprep.subr.mxu0 0.0
        %858 = vmatpush1.xpose.msra.mxu0 0.0
        %859 = vmatprep.subr.mxu0 0.0
        %860 = vmatpush1.xpose.msra.mxu0 0.0
        %861 = vmatprep.subr.mxu0 0.0
        %862 = vmatpush1.xpose.msra.mxu0 0.0
        %863 = vmatprep.subr.mxu0 0.0
        %864 = vmatpush1.xpose.msra.mxu0 0.0
        %865 = vmatprep.subr.mxu0 0.0
        %866 = vmatpush1.xpose.msra.mxu0 0.0
        %867 = vmatprep.subr.mxu0 0.0
        %868 = vmatpush1.xpose.msra.mxu0 0.0
        %869 = vmatprep.subr.mxu0 0.0
        %870 = vmatpush1.xpose.msra.mxu0 0.0
        %871 = vmatprep.subr.mxu0 0.0
        %872 = vmatpush1.xpose.msra.mxu0 0.0
        %873 = vmatprep.subr.mxu0 0.0
        %874 = vmatpush1.xpose.msra.mxu0 0.0
        %875 = vmatprep.subr.mxu0 0.0
        %876 = vmatpush1.xpose.msra.mxu0 0.0
        %877 = vmatprep.subr.mxu0 0.0
        %878 = vmatpush1.xpose.msra.mxu0 0.0
        %879 = vmatprep.subr.mxu0 0.0
        %880 = vmatpush1.xpose.msra.mxu0 0.0
        %881 = vmatprep.subr.mxu0 0.0
        %882 = vmatpush1.xpose.msra.mxu0 0.0
        %883 = vmatprep.subr.mxu0 0.0
        %884 = vmatpush1.xpose.msra.mxu0 0.0
        %885 = vmatprep.subr.mxu0 0.0
        %886 = vmatpush1.xpose.msra.mxu0 0.0
        %887 = vmatprep.subr.mxu0 0.0
        %888 = vmatpush1.xpose.msra.mxu0 0.0
        %889 = vmatprep.subr.mxu0 0.0
        %890 = vmatpush1.xpose.msra.mxu0 0.0
        %891 = vmatprep.subr.mxu0 0.0
        %892 = vmatpush1.xpose.msra.mxu0 0.0
        %893 = vmatprep.subr.mxu0 0.0
        %894 = vmatpush1.xpose.msra.mxu0 0.0
        %895 = vmatprep.subr.mxu0 0.0
        %896 = vmatpush1.xpose.msra.mxu0 0.0
        %897 = vmatprep.subr.mxu0 0.0
        %898 = vmatpush1.xpose.msra.mxu0 0.0
        %899 = vmatprep.subr.mxu0 0.0
        %900 = vmatpush1.xpose.msra.mxu0 0.0
        %901 = vmatprep.subr.mxu0 0.0
        %902 = vmatpush1.xpose.msra.mxu0 0.0
        %903 = vmatprep.subr.mxu0 0.0
        %904 = vmatpush1.xpose.msra.mxu0 0.0
        %905 = vmatprep.subr.mxu0 0.0
        %906 = vmatpush1.xpose.msra.mxu0 0.0
        %907 = vmatprep.subr.mxu0 0.0
        %908 = vmatpush1.xpose.msra.mxu0 0.0
        %909 = vmatprep.subr.mxu0 0.0
        %910 = vmatpush1.xpose.msra.mxu0 0.0
        %911 = vmatprep.subr.mxu0 0.0
        %912 = vmatpush1.xpose.msra.mxu0 0.0
        %913 = vmatprep.subr.mxu0 0.0
        %914 = vmatpush1.xpose.msra.mxu0 0.0
        %915 = vmatprep.mubr.f32.mxu0 0.0
        %916 = vmatmul.mubr.f32.gmra.mrb[0].mxu0 %v847
        %v917 = vpop.f32.mrb[0].mxu0
        %v918 = vadd.f32 0.0, %v917
        %v919 = vpop.f32.mrb[0].mxu0
        %920 = vdwg.mxu0
        %v921 = vsel %vm370, %v918, -inf
        %922 = vmax.xlane.f32.xlu0 %v921
        %v923 = vpop.xlane.xlu0 %922
        %v924 = vsub.f32 %v918, %v923
        %v925 = vmul.f32 %v924, 1.442695
        %v926 = vpow.pop %v925
        %v927 = vsel %vm370, %v926, 0.0
        %928 = vadd.xlane.f32.xlu0 %v927
        %v929 = vpop.xlane.xlu0 %928
        %930 = vrot.lane.b32.xlu0 %v360, 48
        %v931 = vpop.permute.xlu0 %930
        %v934 = vsel %vm370, %v926, 0
        %936 = vmatprep.subr.mxu0 0.0
        %937 = vmatpush1.msra.mxu0 %v931
        %938 = vmatprep.subr.mxu0 0.0
        %939 = vmatpush1.msra.mxu0 0.0
        %940 = vmatprep.subr.mxu0 0.0
        %941 = vmatpush1.msra.mxu0 0.0
        %942 = vmatprep.subr.mxu0 0.0
        %943 = vmatpush1.msra.mxu0 0.0
        %944 = vmatprep.subr.mxu0 0.0
        %945 = vmatpush1.msra.mxu0 0.0
        %946 = vmatprep.subr.mxu0 0.0
        %947 = vmatpush1.msra.mxu0 0.0
        %948 = vmatprep.subr.mxu0 0.0
        %949 = vmatpush1.msra.mxu0 0.0
        %950 = vmatprep.subr.mxu0 0.0
        %951 = vmatpush1.msra.mxu0 0.0
        %952 = vmatprep.subr.mxu0 0.0
        %953 = vmatpush1.msra.mxu0 0.0
        %954 = vmatprep.subr.mxu0 0.0
        %955 = vmatpush1.msra.mxu0 0.0
        %956 = vmatprep.subr.mxu0 0.0
        %957 = vmatpush1.msra.mxu0 0.0
        %958 = vmatprep.subr.mxu0 0.0
        %959 = vmatpush1.msra.mxu0 0.0
        %960 = vmatprep.subr.mxu0 0.0
        %961 = vmatpush1.msra.mxu0 0.0
        %962 = vmatprep.subr.mxu0 0.0
        %963 = vmatpush1.msra.mxu0 0.0
        %964 = vmatprep.subr.mxu0 0.0
        %965 = vmatpush1.msra.mxu0 0.0
        %966 = vmatprep.subr.mxu0 0.0
        %967 = vmatpush1.msra.mxu0 0.0
        %968 = vmatprep.subr.mxu0 0.0
        %969 = vmatpush1.msra.mxu0 0.0
        %970 = vmatprep.subr.mxu0 0.0
        %971 = vmatpush1.msra.mxu0 0.0
        %972 = vmatprep.subr.mxu0 0.0
        %973 = vmatpush1.msra.mxu0 0.0
        %974 = vmatprep.subr.mxu0 0.0
        %975 = vmatpush1.msra.mxu0 0.0
        %976 = vmatprep.subr.mxu0 0.0
        %977 = vmatpush1.msra.mxu0 0.0
        %978 = vmatprep.subr.mxu0 0.0
        %979 = vmatpush1.msra.mxu0 0.0
        %980 = vmatprep.subr.mxu0 0.0
        %981 = vmatpush1.msra.mxu0 0.0
        %982 = vmatprep.subr.mxu0 0.0
        %983 = vmatpush1.msra.mxu0 0.0
        %984 = vmatprep.subr.mxu0 0.0
        %985 = vmatpush1.msra.mxu0 0.0
        %986 = vmatprep.subr.mxu0 0.0
        %987 = vmatpush1.msra.mxu0 0.0
        %988 = vmatprep.subr.mxu0 0.0
        %989 = vmatpush1.msra.mxu0 0.0
        %990 = vmatprep.subr.mxu0 0.0
        %991 = vmatpush1.msra.mxu0 0.0
        %992 = vmatprep.subr.mxu0 0.0
        %993 = vmatpush1.msra.mxu0 0.0
        %994 = vmatprep.subr.mxu0 0.0
        %995 = vmatpush1.msra.mxu0 0.0
        %996 = vmatprep.subr.mxu0 0.0
        %997 = vmatpush1.msra.mxu0 0.0
        %998 = vmatprep.subr.mxu0 0.0
        %999 = vmatpush1.msra.mxu0 0.0
        %1000 = vmatprep.mubr.f32.mxu0 0.0
        %1001 = vmatmul.mubr.f32.gmra.mrb[0].mxu0 %v934
        %v1002 = vpop.f32.mrb[0].mxu0
        %v1003 = vadd.f32 0.0, %v1002
        %v1004 = vpop.f32.mrb[0].mxu0
        %1005 = vdwg.mxu0
        %v1006 = vrcp.pop %v929
        %v1007 = vmul.f32 %v1003, %v1006
        %v1009 = vsel %vm370, %v1007, 0
        %1011 = vmatprep.subr.mxu0 0.0
        %1012 = vmatpush1.msra.mxu0 %v365
        %1013 = vmatprep.subr.mxu0 0.0
        %1014 = vmatpush1.msra.mxu0 0.0
        %1015 = vmatprep.subr.mxu0 0.0
        %1016 = vmatpush1.msra.mxu0 0.0
        %1017 = vmatprep.subr.mxu0 0.0
        %1018 = vmatpush1.msra.mxu0 0.0
        %1019 = vmatprep.subr.mxu0 0.0
        %1020 = vmatpush1.msra.mxu0 0.0
        %1021 = vmatprep.subr.mxu0 0.0
        %1022 = vmatpush1.msra.mxu0 0.0
        %1023 = vmatprep.subr.mxu0 0.0
        %1024 = vmatpush1.msra.mxu0 0.0
        %1025 = vmatprep.subr.mxu0 0.0
        %1026 = vmatpush1.msra.mxu0 0.0
        %1027 = vmatprep.subr.mxu0 0.0
        %1028 = vmatpush1.msra.mxu0 0.0
        %1029 = vmatprep.subr.mxu0 0.0
        %1030 = vmatpush1.msra.mxu0 0.0
        %1031 = vmatprep.subr.mxu0 0.0
        %1032 = vmatpush1.msra.mxu0 0.0
        %1033 = vmatprep.subr.mxu0 0.0
        %1034 = vmatpush1.msra.mxu0 0.0
        %1035 = vmatprep.subr.mxu0 0.0
        %1036 = vmatpush1.msra.mxu0 0.0
        %1037 = vmatprep.subr.mxu0 0.0
        %1038 = vmatpush1.msra.mxu0 0.0
        %1039 = vmatprep.subr.mxu0 0.0
        %1040 = vmatpush1.msra.mxu0 0.0
        %1041 = vmatprep.subr.mxu0 0.0
        %1042 = vmatpush1.msra.mxu0 0.0
        %1043 = vmatprep.subr.mxu0 0.0
        %1044 = vmatpush1.msra.mxu0 0.0
        %1045 = vmatprep.subr.mxu0 0.0
        %1046 = vmatpush1.msra.mxu0 0.0
        %1047 = vmatprep.subr.mxu0 0.0
        %1048 = vmatpush1.msra.mxu0 0.0
        %1049 = vmatprep.subr.mxu0 0.0
        %1050 = vmatpush1.msra.mxu0 0.0
        %1051 = vmatprep.subr.mxu0 0.0
        %1052 = vmatpush1.msra.mxu0 0.0
        %1053 = vmatprep.subr.mxu0 0.0
        %1054 = vmatpush1.msra.mxu0 0.0
        %1055 = vmatprep.subr.mxu0 0.0
        %1056 = vmatpush1.msra.mxu0 0.0
        %1057 = vmatprep.subr.mxu0 0.0
        %1058 = vmatpush1.msra.mxu0 0.0
        %1059 = vmatprep.subr.mxu0 0.0
        %1060 = vmatpush1.msra.mxu0 0.0
        %1061 = vmatprep.subr.mxu0 0.0
        %1062 = vmatpush1.msra.mxu0 0.0
        %1063 = vmatprep.subr.mxu0 0.0
        %1064 = vmatpush1.msra.mxu0 0.0
        %1065 = vmatprep.subr.mxu0 0.0
        %1066 = vmatpush1.msra.mxu0 0.0
        %1067 = vmatprep.subr.mxu0 0.0
        %1068 = vmatpush1.msra.mxu0 0.0
        %1069 = vmatprep.subr.mxu0 0.0
        %1070 = vmatpush1.msra.mxu0 0.0
        %1071 = vmatprep.subr.mxu0 0.0
        %1072 = vmatpush1.msra.mxu0 0.0
        %1073 = vmatprep.subr.mxu0 0.0
        %1074 = vmatpush1.msra.mxu0 0.0
        %1075 = vmatprep.mubr.f32.mxu0 0.0
        %1076 = vmatmul.mubr.f32.gmra.mrb[0].mxu0 %v1009
        %v1077 = vpop.f32.mrb[0].mxu0
        %v1078 = vadd.f32 0.0, %v1077
        %v1079 = vpop.f32.mrb[0].mxu0
        %1080 = vdwg.mxu0
        %v1081 = vadd.f32 %v840, %v1078
        %1082 = vrot.lane.b32.xlu0 %v360, 104
        %v1083 = vpop.permute.xlu0 %1082
        %1084 = vrot.lane.b32.xlu0 %v360, 72
        %v1085 = vpop.permute.xlu0 %1084
        %v1086 = vsel %vm370, %v1083, 0
        %v1088 = vsel %vm370, %v1085, 0
        %1090 = vmatprep.subr.mxu0 0.0
        %1091 = vmatpush1.xpose.msra.mxu0 %v1088
        %1092 = vmatprep.subr.mxu0 0.0
        %1093 = vmatpush1.xpose.msra.mxu0 0.0
        %1094 = vmatprep.subr.mxu0 0.0
        %1095 = vmatpush1.xpose.msra.mxu0 0.0
        %1096 = vmatprep.subr.mxu0 0.0
        %1097 = vmatpush1.xpose.msra.mxu0 0.0
        %1098 = vmatprep.subr.mxu0 0.0
        %1099 = vmatpush1.xpose.msra.mxu0 0.0
        %1100 = vmatprep.subr.mxu0 0.0
        %1101 = vmatpush1.xpose.msra.mxu0 0.0
        %1102 = vmatprep.subr.mxu0 0.0
        %1103 = vmatpush1.xpose.msra.mxu0 0.0
        %1104 = vmatprep.subr.mxu0 0.0
        %1105 = vmatpush1.xpose.msra.mxu0 0.0
        %1106 = vmatprep.subr.mxu0 0.0
        %1107 = vmatpush1.xpose.msra.mxu0 0.0
        %1108 = vmatprep.subr.mxu0 0.0
        %1109 = vmatpush1.xpose.msra.mxu0 0.0
        %1110 = vmatprep.subr.mxu0 0.0
        %1111 = vmatpush1.xpose.msra.mxu0 0.0
        %1112 = vmatprep.subr.mxu0 0.0
        %1113 = vmatpush1.xpose.msra.mxu0 0.0
        %1114 = vmatprep.subr.mxu0 0.0
        %1115 = vmatpush1.xpose.msra.mxu0 0.0
        %1116 = vmatprep.subr.mxu0 0.0
        %1117 = vmatpush1.xpose.msra.mxu0 0.0
        %1118 = vmatprep.subr.mxu0 0.0
        %1119 = vmatpush1.xpose.msra.mxu0 0.0
        %1120 = vmatprep.subr.mxu0 0.0
        %1121 = vmatpush1.xpose.msra.mxu0 0.0
        %1122 = vmatprep.subr.mxu0 0.0
        %1123 = vmatpush1.xpose.msra.mxu0 0.0
        %1124 = vmatprep.subr.mxu0 0.0
        %1125 = vmatpush1.xpose.msra.mxu0 0.0
        %1126 = vmatprep.subr.mxu0 0.0
        %1127 = vmatpush1.xpose.msra.mxu0 0.0
        %1128 = vmatprep.subr.mxu0 0.0
        %1129 = vmatpush1.xpose.msra.mxu0 0.0
        %1130 = vmatprep.subr.mxu0 0.0
        %1131 = vmatpush1.xpose.msra.mxu0 0.0
        %1132 = vmatprep.subr.mxu0 0.0
        %1133 = vmatpush1.xpose.msra.mxu0 0.0
        %1134 = vmatprep.subr.mxu0 0.0
        %1135 = vmatpush1.xpose.msra.mxu0 0.0
        %1136 = vmatprep.subr.mxu0 0.0
        %1137 = vmatpush1.xpose.msra.mxu0 0.0
        %1138 = vmatprep.subr.mxu0 0.0
        %1139 = vmatpush1.xpose.msra.mxu0 0.0
        %1140 = vmatprep.subr.mxu0 0.0
        %1141 = vmatpush1.xpose.msra.mxu0 0.0
        %1142 = vmatprep.subr.mxu0 0.0
        %1143 = vmatpush1.xpose.msra.mxu0 0.0
        %1144 = vmatprep.subr.mxu0 0.0
        %1145 = vmatpush1.xpose.msra.mxu0 0.0
        %1146 = vmatprep.subr.mxu0 0.0
        %1147 = vmatpush1.xpose.msra.mxu0 0.0
        %1148 = vmatprep.subr.mxu0 0.0
        %1149 = vmatpush1.xpose.msra.mxu0 0.0
        %1150 = vmatprep.subr.mxu0 0.0
        %1151 = vmatpush1.xpose.msra.mxu0 0.0
        %1152 = vmatprep.subr.mxu0 0.0
        %1153 = vmatpush1.xpose.msra.mxu0 0.0
        %1154 = vmatprep.mubr.f32.mxu0 0.0
        %1155 = vmatmul.mubr.f32.gmra.mrb[0].mxu0 %v1086
        %v1156 = vpop.f32.mrb[0].mxu0
        %v1157 = vadd.f32 0.0, %v1156
        %v1158 = vpop.f32.mrb[0].mxu0
        %1159 = vdwg.mxu0
        %v1160 = vsel %vm370, %v1157, -inf
        %1161 = vmax.xlane.f32.xlu0 %v1160
        %v1162 = vpop.xlane.xlu0 %1161
        %v1163 = vsub.f32 %v1157, %v1162
        %v1164 = vmul.f32 %v1163, 1.442695
        %v1165 = vpow.pop %v1164
        %v1166 = vsel %vm370, %v1165, 0.0
        %1167 = vadd.xlane.f32.xlu0 %v1166
        %v1168 = vpop.xlane.xlu0 %1167
        %1169 = vrot.lane.b32.xlu0 %v360, 40
        %v1170 = vpop.permute.xlu0 %1169
        %v1173 = vsel %vm370, %v1165, 0
        %1175 = vmatprep.subr.mxu0 0.0
        %1176 = vmatpush1.msra.mxu0 %v1170
        %1177 = vmatprep.subr.mxu0 0.0
        %1178 = vmatpush1.msra.mxu0 0.0
        %1179 = vmatprep.subr.mxu0 0.0
        %1180 = vmatpush1.msra.mxu0 0.0
        %1181 = vmatprep.subr.mxu0 0.0
        %1182 = vmatpush1.msra.mxu0 0.0
        %1183 = vmatprep.subr.mxu0 0.0
        %1184 = vmatpush1.msra.mxu0 0.0
        %1185 = vmatprep.subr.mxu0 0.0
        %1186 = vmatpush1.msra.mxu0 0.0
        %1187 = vmatprep.subr.mxu0 0.0
        %1188 = vmatpush1.msra.mxu0 0.0
        %1189 = vmatprep.subr.mxu0 0.0
        %1190 = vmatpush1.msra.mxu0 0.0
        %1191 = vmatprep.subr.mxu0 0.0
        %1192 = vmatpush1.msra.mxu0 0.0
        %1193 = vmatprep.subr.mxu0 0.0
        %1194 = vmatpush1.msra.mxu0 0.0
        %1195 = vmatprep.subr.mxu0 0.0
        %1196 = vmatpush1.msra.mxu0 0.0
        %1197 = vmatprep.subr.mxu0 0.0
        %1198 = vmatpush1.msra.mxu0 0.0
        %1199 = vmatprep.subr.mxu0 0.0
        %1200 = vmatpush1.msra.mxu0 0.0
        %1201 = vmatprep.subr.mxu0 0.0
        %1202 = vmatpush1.msra.mxu0 0.0
        %1203 = vmatprep.subr.mxu0 0.0
        %1204 = vmatpush1.msra.mxu0 0.0
        %1205 = vmatprep.subr.mxu0 0.0
        %1206 = vmatpush1.msra.mxu0 0.0
        %1207 = vmatprep.subr.mxu0 0.0
        %1208 = vmatpush1.msra.mxu0 0.0
        %1209 = vmatprep.subr.mxu0 0.0
        %1210 = vmatpush1.msra.mxu0 0.0
        %1211 = vmatprep.subr.mxu0 0.0
        %1212 = vmatpush1.msra.mxu0 0.0
        %1213 = vmatprep.subr.mxu0 0.0
        %1214 = vmatpush1.msra.mxu0 0.0
        %1215 = vmatprep.subr.mxu0 0.0
        %1216 = vmatpush1.msra.mxu0 0.0
        %1217 = vmatprep.subr.mxu0 0.0
        %1218 = vmatpush1.msra.mxu0 0.0
        %1219 = vmatprep.subr.mxu0 0.0
        %1220 = vmatpush1.msra.mxu0 0.0
        %1221 = vmatprep.subr.mxu0 0.0
        %1222 = vmatpush1.msra.mxu0 0.0
        %1223 = vmatprep.subr.mxu0 0.0
        %1224 = vmatpush1.msra.mxu0 0.0
        %1225 = vmatprep.subr.mxu0 0.0
        %1226 = vmatpush1.msra.mxu0 0.0
        %1227 = vmatprep.subr.mxu0 0.0
        %1228 = vmatpush1.msra.mxu0 0.0
        %1229 = vmatprep.subr.mxu0 0.0
        %1230 = vmatpush1.msra.mxu0 0.0
        %1231 = vmatprep.subr.mxu0 0.0
        %1232 = vmatpush1.msra.mxu0 0.0
        %1233 = vmatprep.subr.mxu0 0.0
        %1234 = vmatpush1.msra.mxu0 0.0
        %1235 = vmatprep.subr.mxu0 0.0
        %1236 = vmatpush1.msra.mxu0 0.0
        %1237 = vmatprep.subr.mxu0 0.0
        %1238 = vmatpush1.msra.mxu0 0.0
        %1239 = vmatprep.mubr.f32.mxu0 0.0
        %1240 = vmatmul.mubr.f32.gmra.mrb[0].mxu0 %v1173
        %v1241 = vpop.f32.mrb[0].mxu0
        %v1242 = vadd.f32 0.0, %v1241
        %v1243 = vpop.f32.mrb[0].mxu0
        %1244 = vdwg.mxu0
        %v1245 = vrcp.pop %v1168
        %v1246 = vmul.f32 %v1242, %v1245
        %v1248 = vsel %vm370, %v1246, 0
        %1250 = vmatprep.subr.mxu0 0.0
        %1251 = vmatpush1.msra.mxu0 %v366
        %1252 = vmatprep.subr.mxu0 0.0
        %1253 = vmatpush1.msra.mxu0 0.0
        %1254 = vmatprep.subr.mxu0 0.0
        %1255 = vmatpush1.msra.mxu0 0.0
        %1256 = vmatprep.subr.mxu0 0.0
        %1257 = vmatpush1.msra.mxu0 0.0
        %1258 = vmatprep.subr.mxu0 0.0
        %1259 = vmatpush1.msra.mxu0 0.0
        %1260 = vmatprep.subr.mxu0 0.0
        %1261 = vmatpush1.msra.mxu0 0.0
        %1262 = vmatprep.subr.mxu0 0.0
        %1263 = vmatpush1.msra.mxu0 0.0
        %1264 = vmatprep.subr.mxu0 0.0
        %1265 = vmatpush1.msra.mxu0 0.0
        %1266 = vmatprep.subr.mxu0 0.0
        %1267 = vmatpush1.msra.mxu0 0.0
        %1268 = vmatprep.subr.mxu0 0.0
        %1269 = vmatpush1.msra.mxu0 0.0
        %1270 = vmatprep.subr.mxu0 0.0
        %1271 = vmatpush1.msra.mxu0 0.0
        %1272 = vmatprep.subr.mxu0 0.0
        %1273 = vmatpush1.msra.mxu0 0.0
        %1274 = vmatprep.subr.mxu0 0.0
        %1275 = vmatpush1.msra.mxu0 0.0
        %1276 = vmatprep.subr.mxu0 0.0
        %1277 = vmatpush1.msra.mxu0 0.0
        %1278 = vmatprep.subr.mxu0 0.0
        %1279 = vmatpush1.msra.mxu0 0.0
        %1280 = vmatprep.subr.mxu0 0.0
        %1281 = vmatpush1.msra.mxu0 0.0
        %1282 = vmatprep.subr.mxu0 0.0
        %1283 = vmatpush1.msra.mxu0 0.0
        %1284 = vmatprep.subr.mxu0 0.0
        %1285 = vmatpush1.msra.mxu0 0.0
        %1286 = vmatprep.subr.mxu0 0.0
        %1287 = vmatpush1.msra.mxu0 0.0
        %1288 = vmatprep.subr.mxu0 0.0
        %1289 = vmatpush1.msra.mxu0 0.0
        %1290 = vmatprep.subr.mxu0 0.0
        %1291 = vmatpush1.msra.mxu0 0.0
        %1292 = vmatprep.subr.mxu0 0.0
        %1293 = vmatpush1.msra.mxu0 0.0
        %1294 = vmatprep.subr.mxu0 0.0
        %1295 = vmatpush1.msra.mxu0 0.0
        %1296 = vmatprep.subr.mxu0 0.0
        %1297 = vmatpush1.msra.mxu0 0.0
        %1298 = vmatprep.subr.mxu0 0.0
        %1299 = vmatpush1.msra.mxu0 0.0
        %1300 = vmatprep.subr.mxu0 0.0
        %1301 = vmatpush1.msra.mxu0 0.0
        %1302 = vmatprep.subr.mxu0 0.0
        %1303 = vmatpush1.msra.mxu0 0.0
        %1304 = vmatprep.subr.mxu0 0.0
        %1305 = vmatpush1.msra.mxu0 0.0
        %1306 = vmatprep.subr.mxu0 0.0
        %1307 = vmatpush1.msra.mxu0 0.0
        %1308 = vmatprep.subr.mxu0 0.0
        %1309 = vmatpush1.msra.mxu0 0.0
        %1310 = vmatprep.subr.mxu0 0.0
        %1311 = vmatpush1.msra.mxu0 0.0
        %1312 = vmatprep.subr.mxu0 0.0
        %1313 = vmatpush1.msra.mxu0 0.0
        %1314 = vmatprep.mubr.f32.mxu0 0.0
        %1315 = vmatmul.mubr.f32.gmra.mrb[0].mxu0 %v1248
        %v1316 = vpop.f32.mrb[0].mxu0
        %v1317 = vadd.f32 0.0, %v1316
        %v1318 = vpop.f32.mrb[0].mxu0
        %1319 = vdwg.mxu0
        %v1320 = vadd.f32 %v1081, %v1317
        %v1321 = vld [vmem:[%s4] sm:$0x1]
        %v1323 = vlaneseq
        %v1324 = vshrl.u32 %v1323, 7
        %v1325 = vsub.s32 0, %v1324
        %v1326 = vrot.slane %v1321, %v1325
        %v1328 = vadd.f32 %v1320, %v1326
        %vm1329 = vcmask 261120
        %1330 = vst.msk [vmem:[%s268] sm:$0xff] %vm1329, %v1328
        %s1331 = sand.u32 %s141, 1
        %s1332 = scalar_lea.sflag [#allocation4], %s1331
        %s1333 = sand.u32 %s141, 1
        %s1334 = smul.addr %s1333, 8
        %s1335 = scalar_lea.vmem [#allocation8], %s1334
        // Predicated region
        $region53: #{tpu_custom_call.1} parent=39 // pred_check
          %p1336 = pneg %p151
        $region54: #{tpu_custom_call.1} parent=39 // pred_check_branch
          %1338 = sbr.rel (%p1336) target = $region56
        $region55: #{tpu_custom_call.1} parent=39 // pred_region
          %s1340 = ssub.s32 128, 128
          %1341 = vsyncadd %s1332, %s1340
          %s1342 = smul.addr %s23, 128
          %s1343 = scalar_lea.hbm %s5, %s1342
          %s1345 = sshll.u32 %s1335, 4
          %s1346 = int_to_ptr.vmem [resolvable:$true] %s1345
          %1348 = dma.vmem_to_hbm [thread:$0]  %s1346, 128, %s1343, %s1332
        $region56: #{tpu_custom_call.1} parent=39 // pred_fallthru
          _
      $region40: #{tpu_custom_call.1} parent=5 // pred_fallthru
        _
      %p1349 = scmp.le.s32.totalorder 2, %s18
      // Predicated region
      $region57: #{tpu_custom_call.1} parent=5 // pred_check
        %p1350 = pneg %p1349
      $region58: #{tpu_custom_call.1} parent=5 // pred_check_branch
        %1352 = sbr.rel (%p1350) target = $region60
      $region59: #{tpu_custom_call.1} parent=5 // pred_region
        %s1353 = ssub.s32 %s18, 2
        // Predicated region
        $region61: #{tpu_custom_call.1} parent=59 // pred_check
          %p1354 = pneg %p157
        $region62: #{tpu_custom_call.1} parent=59 // pred_check_branch
          %1356 = sbr.rel (%p1354) target = $region64
        $region63: #{tpu_custom_call.1} parent=59 // pred_region
          %s1357 = sand.u32 %s142, 1
          %s1358 = scalar_lea.sflag [#allocation4], %s1357
          %s1359 = sand.u32 %s142, 1
          %s1360 = smul.addr %s1359, 8
          %s1361 = scalar_lea.vmem [#allocation8], %s1360
          %1362 = dma.done %s1358, 128
        $region64: #{tpu_custom_call.1} parent=59 // pred_fallthru
          _
      $region60: #{tpu_custom_call.1} parent=5 // pred_fallthru
        _
    $region6: #{tpu_custom_call.1} parent=1 // loop_footer
      %s22 = sadd.s32 1, %s18
    $region7: #{tpu_custom_call.1} parent=1 // loop_footer_branch
      %17 = sbr.rel target = $region3
    $region8: #{tpu_custom_call.1} parent=1 // loop_exit
      _
    %1363 = vsyncpa [#allocation3], 1
    %s1364 = scalar_lea.sflag [#allocation3], 1
    %1365 = vsyncpa %s1364, 1
    %1366 = vsyncpa [#allocation6], 1
    %1367 = vsyncpa [#allocation4], 1
    %s1368 = scalar_lea.sflag [#allocation4], 1
    %1369 = vsyncpa %s1368, 1

</llo_original>
